<compile_context>
chip_gen: v7x
topology: tpu7x:2x2x1
jax: 0.10.0
libtpu: 0.0.40
codegen_flags: <defaults>
</compile_context>

<pallas_src>
import jax
import jax.numpy as jnp
from jax.experimental import pallas as pl
from jax.experimental.pallas import tpu as pltpu


def _round_up(x, m):
    return (x + m - 1) // m * m


def _select_tile(B, tb):
    """Pick the batch tile: multiple of 8 (f32 sublanes), >=2 grid steps when the
    batch allows (v7x megacore sharding over the "parallel" axis), and even the
    tile across steps so padding rows are minimal (zero whenever B divides cleanly)."""
    tb = max(8, (tb // 8) * 8)          # enforce sublane granularity in the wrapper
    B8 = _round_up(B, 8)
    tb = min(tb, B8)
    n_steps = pl.cdiv(B8, tb)
    if n_steps < 2 and B8 >= 16:
        n_steps = 2                     # keep both v7x TensorCores busy
    tb = max(8, _round_up(pl.cdiv(B8, n_steps), 8))
    B_pad = n_steps * tb
    return tb, B_pad


def _mlp_kernel(ctx_ref, pos_ref, w1c_ref, w1p_ref, b1_ref,
                w2_ref, b2_ref, w3_ref, b3_ref, o_ref):
    # ---- Layer 1: ctx @ W1_ctx on the MXU (bf16 operands, f32 accumulation) ----
    ctx = ctx_ref[...]
    if ctx.dtype != jnp.bfloat16:
        ctx = ctx.astype(jnp.bfloat16)
    h1 = jnp.dot(ctx, w1c_ref[...], preferred_element_type=jnp.float32)

    # Positions term (K=4): 4 unrolled broadcast multiply-adds on the VPU instead of
    # a K-padded-to-128 MXU pass (>96% wasted) -- the VPU slot has plenty of slack.
    pos = pos_ref[...]        # (tb, 4) f32
    w1p = w1p_ref[...]        # (4, H)  f32
    for k in range(4):
        h1 = h1 + pos[:, k:k + 1] * w1p[k:k + 1, :]
    h1 = jnp.maximum(h1 + b1_ref[...], 0.0)            # f32 bias + ReLU (VPU)

    # ---- Layer 2 ----
    h2 = jnp.dot(h1.astype(jnp.bfloat16), w2_ref[...],
                 preferred_element_type=jnp.float32)
    h2 = jnp.maximum(h2 + b2_ref[...], 0.0)

    # ---- Layer 3 ----
    y = jnp.dot(h2.astype(jnp.bfloat16), w3_ref[...],
                preferred_element_type=jnp.float32)
    o_ref[...] = (y + b3_ref[...]).astype(o_ref.dtype)


def image_projection(context_features, positions, params, *, tb=256):
    """Pallas implementation of ImageProjectionModule.forward.

    context_features: [B, clip_dim] float32 or bfloat16
    positions:        [B, 4]        float32
    params: (w1_ctx[bf16], w1_pos[f32], b1, w2[bf16], b2, w3[bf16], b3),
            weights stored [in_features, out_features] (transposed vs torch);
            the first Linear's weight is split along in_features (ctx | pos),
            which replaces the torch.cat.
    returns:          [B, clip_dim] float32

    NOTE: weights are bf16 with f32 accumulation; results differ from a pure-f32
    torch module by O(1e-2) relative error.
    """
    # TODO(synk): add a hidden-tiled path (second "arbitrary" grid axis + f32 VMEM
    # accumulator) for hidden >= ~4k, where resident W1/W2/W3 exceed v7x's 64 MiB VMEM.
    w1c, w1p, b1, w2, b2, w3, b3 = params
    B, clip_dim = context_features.shape
    hidden = w1c.shape[1]
    assert positions.shape == (B, 4)
    assert w1c.shape == (clip_dim, hidden)
    assert w1p.shape == (4, hidden)
    assert w2.shape == (hidden, hidden)
    assert w3.shape == (hidden, clip_dim)

    tb, B_pad = _select_tile(B, tb)
    if B_pad != B:
        pad = B_pad - B
        context_features = jnp.pad(context_features, ((0, pad), (0, 0)))
        positions = jnp.pad(positions, ((0, pad), (0, 0)))

    grid = (B_pad // tb,)

    # VMEM budget: single-buffered resident weights + double-buffered streamed tiles
    # + h1/h2/bf16-cast intermediates, with ~30% headroom; clamp to v7x's 64 MiB/TC.
    weight_bytes = sum(int(a.size) * a.dtype.itemsize
                       for a in (w1c, w1p, b1, w2, b2, w3, b3))
    stream_bytes = 2 * (tb * clip_dim * context_features.dtype.itemsize   # ctx tile
                        + tb * 4 * 4                                      # pos tile
                        + tb * clip_dim * 4)                              # out tile
    interm_bytes = 3 * tb * hidden * 4
    vmem_limit = int(1.3 * (weight_bytes + stream_bytes + interm_bytes))
    vmem_limit = max(vmem_limit, 4 * 1024 * 1024)
    vmem_limit = min(vmem_limit, 64 * 1024 * 1024)

    flops = 2 * B_pad * (clip_dim * hidden + 4 * hidden
                         + hidden * hidden + hidden * clip_dim)
    operands = (context_features, positions, w1c, w1p, b1, w2, b2, w3, b3)
    bytes_accessed = sum(int(a.size) * a.dtype.itemsize for a in operands)
    bytes_accessed += B_pad * clip_dim * 4  # output

    def build(single_buffer_weights):
        # Constant-index blocks are fetched once; Buffered(1) drops their second
        # (useless) pipeline buffer, halving resident-weight VMEM.
        const_kw = dict(pipeline_mode=pl.Buffered(1)) if single_buffer_weights else {}
        const = lambda i: (0, 0)
        in_specs = [
            pl.BlockSpec((tb, clip_dim), lambda i: (i, 0)),               # ctx tile
            pl.BlockSpec((tb, 4), lambda i: (i, 0)),                      # pos tile
            pl.BlockSpec((clip_dim, hidden), const, **const_kw),          # W1_ctx (bf16)
            pl.BlockSpec((4, hidden), const, **const_kw),                 # W1_pos (f32)
            pl.BlockSpec((1, hidden), const, **const_kw),                 # b1
            pl.BlockSpec((hidden, hidden), const, **const_kw),            # W2 (bf16)
            pl.BlockSpec((1, hidden), const, **const_kw),                 # b2
            pl.BlockSpec((hidden, clip_dim), const, **const_kw),          # W3 (bf16)
            pl.BlockSpec((1, clip_dim), const, **const_kw),               # b3
        ]
        return pl.pallas_call(
            _mlp_kernel,
            out_shape=jax.ShapeDtypeStruct((B_pad, clip_dim), jnp.float32),
            grid_spec=pltpu.PrefetchScalarGridSpec(
                num_scalar_prefetch=0,
                grid=grid,
                in_specs=in_specs,
                out_specs=pl.BlockSpec((tb, clip_dim), lambda i: (i, 0)),
            ),
            compiler_params=pltpu.CompilerParams(
                dimension_semantics=("parallel",),
                vmem_limit_bytes=vmem_limit,
            ),
            cost_estimate=pl.CostEstimate(
                flops=flops, transcendentals=0, bytes_accessed=bytes_accessed),
        )

    try:
        out = build(single_buffer_weights=True)(*operands)
    except Exception:
        # Fallback for jax builds that reject pipeline_mode=pl.Buffered(1);
        # identical semantics, just default double-buffered weights.
        out = build(single_buffer_weights=False)(*operands)
    return out[:B]


def init_params(key, clip_dim, hidden_dim):
    """Deterministic init matching the nn.Sequential shapes.

    Weights are stored [in, out] (transposed vs torch) in bf16 for the MXU; the first
    Linear's weight is split along in_features:
      w1_ctx <- torch W1[:, :clip_dim].T ,  w1_pos <- torch W1[:, clip_dim:].T
    Biases stay f32 (added after f32 accumulation).
    """
    din = clip_dim + 4
    s1 = 1.0 / jnp.sqrt(din)
    s2 = 1.0 / jnp.sqrt(hidden_dim)
    k1, k2, k3, k4, k5, k6, k7 = jax.random.split(key, 7)
    w1c = (jax.random.normal(k1, (clip_dim, hidden_dim), jnp.float32) * s1).astype(jnp.bfloat16)
    w1p = jax.random.normal(k2, (4, hidden_dim), jnp.float32) * s1     # tiny, kept f32
    b1 = jax.random.normal(k3, (1, hidden_dim), jnp.float32) * 0.01
    w2 = (jax.random.normal(k4, (hidden_dim, hidden_dim), jnp.float32) * s2).astype(jnp.bfloat16)
    b2 = jax.random.normal(k5, (1, hidden_dim), jnp.float32) * 0.01
    w3 = (jax.random.normal(k6, (hidden_dim, clip_dim), jnp.float32) * s2).astype(jnp.bfloat16)
    b3 = jax.random.normal(k7, (1, clip_dim), jnp.float32) * 0.01
    return (w1c, w1p, b1, w2, b2, w3, b3)


def reference(context_features, positions, params):
    """Pure-JAX reference with the same bf16-operand / f32-accumulate math."""
    w1c, w1p, b1, w2, b2, w3, b3 = params
    h1 = (jnp.dot(context_features.astype(jnp.bfloat16), w1c,
                  preferred_element_type=jnp.float32)
          + jnp.dot(positions, w1p, preferred_element_type=jnp.float32) + b1)
    h1 = jnp.maximum(h1, 0.0)
    h2 = jnp.maximum(
        jnp.dot(h1.astype(jnp.bfloat16), w2, preferred_element_type=jnp.float32) + b2,
        0.0)
    return jnp.dot(h2.astype(jnp.bfloat16), w3, preferred_element_type=jnp.float32) + b3


if __name__ == "__main__":
    # Small shapes consistent with the module (clip_dim, hidden_dim scaled down).
    clip_dim, hidden_dim, batch = 128, 256, 40

    key = jax.random.PRNGKey(0)
    k_params, k_ctx, k_pos = jax.random.split(key, 3)
    params = init_params(k_params, clip_dim, hidden_dim)

    context_features = jax.random.normal(k_ctx, (batch, clip_dim), jnp.float32)
    positions = jax.random.uniform(k_pos, (batch, 4), jnp.float32)

    # Default tb=256 (production); the wrapper clamps it to the small batch, keeps a
    # 2-step grid (exercises megacore semantics) and pads 40 -> 48 rows internally.
    out = image_projection(context_features, positions, params)
    out = jax.block_until_ready(out)

    ref = reference(context_features, positions, params)
    assert out.shape == (batch, clip_dim)
    assert jnp.allclose(out, ref, atol=2e-2, rtol=2e-2), "mismatch vs reference"
    print("KERNEL_OK")
</pallas_src>

<mosaic_0001>
module attributes {stable_mosaic.version = 11 : i64} {
  func.func @_mlp_kernel(%arg0: i32, %arg1: memref<24x128xf32, #tpu.memory_space<vmem>>, %arg2: memref<24x4xf32, #tpu.memory_space<vmem>>, %arg3: memref<128x256xbf16, #tpu.memory_space<vmem>>, %arg4: memref<4x256xf32, #tpu.memory_space<vmem>>, %arg5: memref<1x256xf32, #tpu.memory_space<vmem>>, %arg6: memref<256x256xbf16, #tpu.memory_space<vmem>>, %arg7: memref<1x256xf32, #tpu.memory_space<vmem>>, %arg8: memref<256x128xbf16, #tpu.memory_space<vmem>>, %arg9: memref<1x128xf32, #tpu.memory_space<vmem>>, %arg10: memref<24x128xf32, #tpu.memory_space<vmem>>) attributes {dimension_semantics = [#tpu.dimension_semantics<parallel>], iteration_bounds = array<i64: 2>, scalar_prefetch = 0 : i64, scratch_operands = 0 : i64, tpu.core_type = #tpu.core_type<tc>, window_params = [{transform_indices = @transform_0, window_bounds = array<i64: 24, 128>}, {transform_indices = @transform_1, window_bounds = array<i64: 24, 4>}, {pipeline_mode = #tpu.pipeline_mode<synchronous>, transform_indices = @transform_2, window_bounds = array<i64: 128, 256>}, {pipeline_mode = #tpu.pipeline_mode<synchronous>, transform_indices = @transform_3, window_bounds = array<i64: 4, 256>}, {pipeline_mode = #tpu.pipeline_mode<synchronous>, transform_indices = @transform_4, window_bounds = array<i64: 1, 256>}, {pipeline_mode = #tpu.pipeline_mode<synchronous>, transform_indices = @transform_5, window_bounds = array<i64: 256, 256>}, {pipeline_mode = #tpu.pipeline_mode<synchronous>, transform_indices = @transform_6, window_bounds = array<i64: 1, 256>}, {pipeline_mode = #tpu.pipeline_mode<synchronous>, transform_indices = @transform_7, window_bounds = array<i64: 256, 128>}, {pipeline_mode = #tpu.pipeline_mode<synchronous>, transform_indices = @transform_8, window_bounds = array<i64: 1, 128>}, {transform_indices = @transform_9, window_bounds = array<i64: 24, 128>}]} {
    %c0 = arith.constant 0 : index
    %c0_0 = arith.constant 0 : index
    %0 = vector.load %arg1[%c0, %c0_0] : memref<24x128xf32, #tpu.memory_space<vmem>>, vector<24x128xf32>
    %1 = arith.truncf %0 : vector<24x128xf32> to vector<24x128xbf16>
    %c0_1 = arith.constant 0 : index
    %c0_2 = arith.constant 0 : index
    %2 = vector.load %arg3[%c0_1, %c0_2] : memref<128x256xbf16, #tpu.memory_space<vmem>>, vector<128x256xbf16>
    %cst = arith.constant dense<0.000000e+00> : vector<24x256xf32>
    %3 = tpu.matmul %1, %2, %cst {dimension_numbers = #tpu.dot_dimension_numbers<[1], [0], [0], [1], [0, 0, 1, 1], [], []>} : vector<24x128xbf16>, vector<128x256xbf16>, vector<24x256xf32> -> vector<24x256xf32>
    %c0_3 = arith.constant 0 : index
    %c0_4 = arith.constant 0 : index
    %4 = vector.load %arg2[%c0_3, %c0_4] : memref<24x4xf32, #tpu.memory_space<vmem>>, vector<24x4xf32>
    %c0_5 = arith.constant 0 : index
    %c0_6 = arith.constant 0 : index
    %5 = vector.load %arg4[%c0_5, %c0_6] : memref<4x256xf32, #tpu.memory_space<vmem>>, vector<4x256xf32>
    %6 = vector.extract_strided_slice %4 {offsets = [0, 0], sizes = [24, 1], strides = [1, 1]} : vector<24x4xf32> to vector<24x1xf32>
    %7 = vector.extract_strided_slice %5 {offsets = [0, 0], sizes = [1, 256], strides = [1, 1]} : vector<4x256xf32> to vector<1x256xf32>
    %8 = vector.broadcast %6 : vector<24x1xf32> to vector<24x256xf32>
    %9 = vector.broadcast %7 : vector<1x256xf32> to vector<24x256xf32>
    %10 = arith.mulf %8, %9 : vector<24x256xf32>
    %11 = arith.addf %3, %10 : vector<24x256xf32>
    %12 = vector.extract_strided_slice %4 {offsets = [0, 1], sizes = [24, 1], strides = [1, 1]} : vector<24x4xf32> to vector<24x1xf32>
    %13 = vector.extract_strided_slice %5 {offsets = [1, 0], sizes = [1, 256], strides = [1, 1]} : vector<4x256xf32> to vector<1x256xf32>
    %14 = vector.broadcast %12 : vector<24x1xf32> to vector<24x256xf32>
    %15 = vector.broadcast %13 : vector<1x256xf32> to vector<24x256xf32>
    %16 = arith.mulf %14, %15 : vector<24x256xf32>
    %17 = arith.addf %11, %16 : vector<24x256xf32>
    %18 = vector.extract_strided_slice %4 {offsets = [0, 2], sizes = [24, 1], strides = [1, 1]} : vector<24x4xf32> to vector<24x1xf32>
    %19 = vector.extract_strided_slice %5 {offsets = [2, 0], sizes = [1, 256], strides = [1, 1]} : vector<4x256xf32> to vector<1x256xf32>
    %20 = vector.broadcast %18 : vector<24x1xf32> to vector<24x256xf32>
    %21 = vector.broadcast %19 : vector<1x256xf32> to vector<24x256xf32>
    %22 = arith.mulf %20, %21 : vector<24x256xf32>
    %23 = arith.addf %17, %22 : vector<24x256xf32>
    %24 = vector.extract_strided_slice %4 {offsets = [0, 3], sizes = [24, 1], strides = [1, 1]} : vector<24x4xf32> to vector<24x1xf32>
    %25 = vector.extract_strided_slice %5 {offsets = [3, 0], sizes = [1, 256], strides = [1, 1]} : vector<4x256xf32> to vector<1x256xf32>
    %26 = vector.broadcast %24 : vector<24x1xf32> to vector<24x256xf32>
    %27 = vector.broadcast %25 : vector<1x256xf32> to vector<24x256xf32>
    %28 = arith.mulf %26, %27 : vector<24x256xf32>
    %29 = arith.addf %23, %28 : vector<24x256xf32>
    %c0_7 = arith.constant 0 : index
    %c0_8 = arith.constant 0 : index
    %30 = vector.load %arg5[%c0_7, %c0_8] : memref<1x256xf32, #tpu.memory_space<vmem>>, vector<1x256xf32>
    %31 = vector.broadcast %30 : vector<1x256xf32> to vector<24x256xf32>
    %32 = arith.addf %29, %31 : vector<24x256xf32>
    %cst_9 = arith.constant 0.000000e+00 : f32
    %33 = vector.broadcast %cst_9 : f32 to vector<24x256xf32>
    %34 = arith.maximumf %32, %33 : vector<24x256xf32>
    %35 = arith.truncf %34 : vector<24x256xf32> to vector<24x256xbf16>
    %c0_10 = arith.constant 0 : index
    %c0_11 = arith.constant 0 : index
    %36 = vector.load %arg6[%c0_10, %c0_11] : memref<256x256xbf16, #tpu.memory_space<vmem>>, vector<256x256xbf16>
    %cst_12 = arith.constant dense<0.000000e+00> : vector<24x256xf32>
    %37 = tpu.matmul %35, %36, %cst_12 {dimension_numbers = #tpu.dot_dimension_numbers<[1], [0], [0], [1], [0, 0, 1, 1], [], []>} : vector<24x256xbf16>, vector<256x256xbf16>, vector<24x256xf32> -> vector<24x256xf32>
    %c0_13 = arith.constant 0 : index
    %c0_14 = arith.constant 0 : index
    %38 = vector.load %arg7[%c0_13, %c0_14] : memref<1x256xf32, #tpu.memory_space<vmem>>, vector<1x256xf32>
    %39 = vector.broadcast %38 : vector<1x256xf32> to vector<24x256xf32>
    %40 = arith.addf %37, %39 : vector<24x256xf32>
    %cst_15 = arith.constant 0.000000e+00 : f32
    %41 = vector.broadcast %cst_15 : f32 to vector<24x256xf32>
    %42 = arith.maximumf %40, %41 : vector<24x256xf32>
    %43 = arith.truncf %42 : vector<24x256xf32> to vector<24x256xbf16>
    %c0_16 = arith.constant 0 : index
    %c0_17 = arith.constant 0 : index
    %44 = vector.load %arg8[%c0_16, %c0_17] : memref<256x128xbf16, #tpu.memory_space<vmem>>, vector<256x128xbf16>
    %cst_18 = arith.constant dense<0.000000e+00> : vector<24x128xf32>
    %45 = tpu.matmul %43, %44, %cst_18 {dimension_numbers = #tpu.dot_dimension_numbers<[1], [0], [0], [1], [0, 0, 1, 1], [], []>} : vector<24x256xbf16>, vector<256x128xbf16>, vector<24x128xf32> -> vector<24x128xf32>
    %c0_19 = arith.constant 0 : index
    %c0_20 = arith.constant 0 : index
    %46 = vector.load %arg9[%c0_19, %c0_20] : memref<1x128xf32, #tpu.memory_space<vmem>>, vector<1x128xf32>
    %47 = vector.broadcast %46 : vector<1x128xf32> to vector<24x128xf32>
    %48 = arith.addf %45, %47 : vector<24x128xf32>
    %c0_21 = arith.constant 0 : index
    %c0_22 = arith.constant 0 : index
    %49 = vector.load %arg10[%c0_21, %c0_22] : memref<24x128xf32, #tpu.memory_space<vmem>>, vector<24x128xf32>
    tpu.vector_store %arg10[%c0_21, %c0_22], %48 {strides = array<i32>} : memref<24x128xf32, #tpu.memory_space<vmem>>, vector<24x128xf32>,
    return
  }
  func.func @transform_0(%arg0: i32) -> (i32, i32) {
    %c0_i32 = arith.constant 0 : i32
    %c0_i32_0 = arith.constant 0 : i32
    return %arg0, %c0_i32 : i32, i32
  }
  func.func @transform_1(%arg0: i32) -> (i32, i32) {
    %c0_i32 = arith.constant 0 : i32
    %c0_i32_0 = arith.constant 0 : i32
    return %arg0, %c0_i32 : i32, i32
  }
  func.func @transform_2(%arg0: i32) -> (i32, i32) {
    %c0_i32 = arith.constant 0 : i32
    %c0_i32_0 = arith.constant 0 : i32
    %c0_i32_1 = arith.constant 0 : i32
    return %c0_i32, %c0_i32_0 : i32, i32
  }
  func.func @transform_3(%arg0: i32) -> (i32, i32) {
    %c0_i32 = arith.constant 0 : i32
    %c0_i32_0 = arith.constant 0 : i32
    %c0_i32_1 = arith.constant 0 : i32
    return %c0_i32, %c0_i32_0 : i32, i32
  }
  func.func @transform_4(%arg0: i32) -> (i32, i32) {
    %c0_i32 = arith.constant 0 : i32
    %c0_i32_0 = arith.constant 0 : i32
    %c0_i32_1 = arith.constant 0 : i32
    return %c0_i32, %c0_i32_0 : i32, i32
  }
  func.func @transform_5(%arg0: i32) -> (i32, i32) {
    %c0_i32 = arith.constant 0 : i32
    %c0_i32_0 = arith.constant 0 : i32
    %c0_i32_1 = arith.constant 0 : i32
    return %c0_i32, %c0_i32_0 : i32, i32
  }
  func.func @transform_6(%arg0: i32) -> (i32, i32) {
    %c0_i32 = arith.constant 0 : i32
    %c0_i32_0 = arith.constant 0 : i32
    %c0_i32_1 = arith.constant 0 : i32
    return %c0_i32, %c0_i32_0 : i32, i32
  }
  func.func @transform_7(%arg0: i32) -> (i32, i32) {
    %c0_i32 = arith.constant 0 : i32
    %c0_i32_0 = arith.constant 0 : i32
    %c0_i32_1 = arith.constant 0 : i32
    return %c0_i32, %c0_i32_0 : i32, i32
  }
  func.func @transform_8(%arg0: i32) -> (i32, i32) {
    %c0_i32 = arith.constant 0 : i32
    %c0_i32_0 = arith.constant 0 : i32
    %c0_i32_1 = arith.constant 0 : i32
    return %c0_i32, %c0_i32_0 : i32, i32
  }
  func.func @transform_9(%arg0: i32) -> (i32, i32) {
    %c0_i32 = arith.constant 0 : i32
    %c0_i32_0 = arith.constant 0 : i32
    return %arg0, %c0_i32 : i32, i32
  }
}

module attributes {stable_mosaic.version = 11 : i64} {
  func.func @_mlp_kernel(%arg0: i32, %arg1: memref<24x128xf32, #tpu.memory_space<vmem>>, %arg2: memref<24x4xf32, #tpu.memory_space<vmem>>, %arg3: memref<128x256xbf16, #tpu.memory_space<vmem>>, %arg4: memref<4x256xf32, #tpu.memory_space<vmem>>, %arg5: memref<1x256xf32, #tpu.memory_space<vmem>>, %arg6: memref<256x256xbf16, #tpu.memory_space<vmem>>, %arg7: memref<1x256xf32, #tpu.memory_space<vmem>>, %arg8: memref<256x128xbf16, #tpu.memory_space<vmem>>, %arg9: memref<1x128xf32, #tpu.memory_space<vmem>>, %arg10: memref<24x128xf32, #tpu.memory_space<vmem>>) attributes {dimension_semantics = [#tpu.dimension_semantics<parallel>], iteration_bounds = array<i64: 2>, scalar_prefetch = 0 : i64, scratch_operands = 0 : i64, tpu.core_type = #tpu.core_type<tc>, window_params = [{transform_indices = @transform_0, window_bounds = array<i64: 24, 128>}, {transform_indices = @transform_1, window_bounds = array<i64: 24, 4>}, {pipeline_mode = #tpu.pipeline_mode<synchronous>, transform_indices = @transform_2, window_bounds = array<i64: 128, 256>}, {pipeline_mode = #tpu.pipeline_mode<synchronous>, transform_indices = @transform_3, window_bounds = array<i64: 4, 256>}, {pipeline_mode = #tpu.pipeline_mode<synchronous>, transform_indices = @transform_4, window_bounds = array<i64: 1, 256>}, {pipeline_mode = #tpu.pipeline_mode<synchronous>, transform_indices = @transform_5, window_bounds = array<i64: 256, 256>}, {pipeline_mode = #tpu.pipeline_mode<synchronous>, transform_indices = @transform_6, window_bounds = array<i64: 1, 256>}, {pipeline_mode = #tpu.pipeline_mode<synchronous>, transform_indices = @transform_7, window_bounds = array<i64: 256, 128>}, {pipeline_mode = #tpu.pipeline_mode<synchronous>, transform_indices = @transform_8, window_bounds = array<i64: 1, 128>}, {transform_indices = @transform_9, window_bounds = array<i64: 24, 128>}]} {
    %c0 = arith.constant 0 : index
    %c0_0 = arith.constant 0 : index
    %0 = vector.load %arg1[%c0, %c0_0] : memref<24x128xf32, #tpu.memory_space<vmem>>, vector<24x128xf32>
    %1 = arith.truncf %0 : vector<24x128xf32> to vector<24x128xbf16>
    %c0_1 = arith.constant 0 : index
    %c0_2 = arith.constant 0 : index
    %2 = vector.load %arg3[%c0_1, %c0_2] : memref<128x256xbf16, #tpu.memory_space<vmem>>, vector<128x256xbf16>
    %cst = arith.constant dense<0.000000e+00> : vector<24x256xf32>
    %3 = tpu.matmul %1, %2, %cst {dimension_numbers = #tpu.dot_dimension_numbers<[1], [0], [0], [1], [0, 0, 1, 1], [], []>} : vector<24x128xbf16>, vector<128x256xbf16>, vector<24x256xf32> -> vector<24x256xf32>
    %c0_3 = arith.constant 0 : index
    %c0_4 = arith.constant 0 : index
    %4 = vector.load %arg2[%c0_3, %c0_4] : memref<24x4xf32, #tpu.memory_space<vmem>>, vector<24x4xf32>
    %c0_5 = arith.constant 0 : index
    %c0_6 = arith.constant 0 : index
    %5 = vector.load %arg4[%c0_5, %c0_6] : memref<4x256xf32, #tpu.memory_space<vmem>>, vector<4x256xf32>
    %6 = vector.extract_strided_slice %4 {offsets = [0, 0], sizes = [24, 1], strides = [1, 1]} : vector<24x4xf32> to vector<24x1xf32>
    %7 = vector.extract_strided_slice %5 {offsets = [0, 0], sizes = [1, 256], strides = [1, 1]} : vector<4x256xf32> to vector<1x256xf32>
    %8 = vector.broadcast %6 : vector<24x1xf32> to vector<24x256xf32>
    %9 = vector.broadcast %7 : vector<1x256xf32> to vector<24x256xf32>
    %10 = arith.mulf %8, %9 : vector<24x256xf32>
    %11 = arith.addf %3, %10 : vector<24x256xf32>
    %12 = vector.extract_strided_slice %4 {offsets = [0, 1], sizes = [24, 1], strides = [1, 1]} : vector<24x4xf32> to vector<24x1xf32>
    %13 = vector.extract_strided_slice %5 {offsets = [1, 0], sizes = [1, 256], strides = [1, 1]} : vector<4x256xf32> to vector<1x256xf32>
    %14 = vector.broadcast %12 : vector<24x1xf32> to vector<24x256xf32>
    %15 = vector.broadcast %13 : vector<1x256xf32> to vector<24x256xf32>
    %16 = arith.mulf %14, %15 : vector<24x256xf32>
    %17 = arith.addf %11, %16 : vector<24x256xf32>
    %18 = vector.extract_strided_slice %4 {offsets = [0, 2], sizes = [24, 1], strides = [1, 1]} : vector<24x4xf32> to vector<24x1xf32>
    %19 = vector.extract_strided_slice %5 {offsets = [2, 0], sizes = [1, 256], strides = [1, 1]} : vector<4x256xf32> to vector<1x256xf32>
    %20 = vector.broadcast %18 : vector<24x1xf32> to vector<24x256xf32>
    %21 = vector.broadcast %19 : vector<1x256xf32> to vector<24x256xf32>
    %22 = arith.mulf %20, %21 : vector<24x256xf32>
    %23 = arith.addf %17, %22 : vector<24x256xf32>
    %24 = vector.extract_strided_slice %4 {offsets = [0, 3], sizes = [24, 1], strides = [1, 1]} : vector<24x4xf32> to vector<24x1xf32>
    %25 = vector.extract_strided_slice %5 {offsets = [3, 0], sizes = [1, 256], strides = [1, 1]} : vector<4x256xf32> to vector<1x256xf32>
    %26 = vector.broadcast %24 : vector<24x1xf32> to vector<24x256xf32>
    %27 = vector.broadcast %25 : vector<1x256xf32> to vector<24x256xf32>
    %28 = arith.mulf %26, %27 : vector<24x256xf32>
    %29 = arith.addf %23, %28 : vector<24x256xf32>
    %c0_7 = arith.constant 0 : index
    %c0_8 = arith.constant 0 : index
    %30 = vector.load %arg5[%c0_7, %c0_8] : memref<1x256xf32, #tpu.memory_space<vmem>>, vector<1x256xf32>
    %31 = vector.broadcast %30 : vector<1x256xf32> to vector<24x256xf32>
    %32 = arith.addf %29, %31 : vector<24x256xf32>
    %cst_9 = arith.constant 0.000000e+00 : f32
    %33 = vector.broadcast %cst_9 : f32 to vector<24x256xf32>
    %34 = arith.maximumf %32, %33 : vector<24x256xf32>
    %35 = arith.truncf %34 : vector<24x256xf32> to vector<24x256xbf16>
    %c0_10 = arith.constant 0 : index
    %c0_11 = arith.constant 0 : index
    %36 = vector.load %arg6[%c0_10, %c0_11] : memref<256x256xbf16, #tpu.memory_space<vmem>>, vector<256x256xbf16>
    %cst_12 = arith.constant dense<0.000000e+00> : vector<24x256xf32>
    %37 = tpu.matmul %35, %36, %cst_12 {dimension_numbers = #tpu.dot_dimension_numbers<[1], [0], [0], [1], [0, 0, 1, 1], [], []>} : vector<24x256xbf16>, vector<256x256xbf16>, vector<24x256xf32> -> vector<24x256xf32>
    %c0_13 = arith.constant 0 : index
    %c0_14 = arith.constant 0 : index
    %38 = vector.load %arg7[%c0_13, %c0_14] : memref<1x256xf32, #tpu.memory_space<vmem>>, vector<1x256xf32>
    %39 = vector.broadcast %38 : vector<1x256xf32> to vector<24x256xf32>
    %40 = arith.addf %37, %39 : vector<24x256xf32>
    %cst_15 = arith.constant 0.000000e+00 : f32
    %41 = vector.broadcast %cst_15 : f32 to vector<24x256xf32>
    %42 = arith.maximumf %40, %41 : vector<24x256xf32>
    %43 = arith.truncf %42 : vector<24x256xf32> to vector<24x256xbf16>
    %c0_16 = arith.constant 0 : index
    %c0_17 = arith.constant 0 : index
    %44 = vector.load %arg8[%c0_16, %c0_17] : memref<256x128xbf16, #tpu.memory_space<vmem>>, vector<256x128xbf16>
    %cst_18 = arith.constant dense<0.000000e+00> : vector<24x128xf32>
    %45 = tpu.matmul %43, %44, %cst_18 {dimension_numbers = #tpu.dot_dimension_numbers<[1], [0], [0], [1], [0, 0, 1, 1], [], []>} : vector<24x256xbf16>, vector<256x128xbf16>, vector<24x128xf32> -> vector<24x128xf32>
    %c0_19 = arith.constant 0 : index
    %c0_20 = arith.constant 0 : index
    %46 = vector.load %arg9[%c0_19, %c0_20] : memref<1x128xf32, #tpu.memory_space<vmem>>, vector<1x128xf32>
    %47 = vector.broadcast %46 : vector<1x128xf32> to vector<24x128xf32>
    %48 = arith.addf %45, %47 : vector<24x128xf32>
    %c0_21 = arith.constant 0 : index
    %c0_22 = arith.constant 0 : index
    %49 = vector.load %arg10[%c0_21, %c0_22] : memref<24x128xf32, #tpu.memory_space<vmem>>, vector<24x128xf32>
    tpu.vector_store %arg10[%c0_21, %c0_22], %48 {strides = array<i32>} : memref<24x128xf32, #tpu.memory_space<vmem>>, vector<24x128xf32>,
    return
  }
  func.func @transform_0(%arg0: i32) -> (i32, i32) {
    %c0_i32 = arith.constant 0 : i32
    %c0_i32_0 = arith.constant 0 : i32
    return %arg0, %c0_i32 : i32, i32
  }
  func.func @transform_1(%arg0: i32) -> (i32, i32) {
    %c0_i32 = arith.constant 0 : i32
    %c0_i32_0 = arith.constant 0 : i32
    return %arg0, %c0_i32 : i32, i32
  }
  func.func @transform_2(%arg0: i32) -> (i32, i32) {
    %c0_i32 = arith.constant 0 : i32
    %c0_i32_0 = arith.constant 0 : i32
    %c0_i32_1 = arith.constant 0 : i32
    return %c0_i32, %c0_i32_0 : i32, i32
  }
  func.func @transform_3(%arg0: i32) -> (i32, i32) {
    %c0_i32 = arith.constant 0 : i32
    %c0_i32_0 = arith.constant 0 : i32
    %c0_i32_1 = arith.constant 0 : i32
    return %c0_i32, %c0_i32_0 : i32, i32
  }
  func.func @transform_4(%arg0: i32) -> (i32, i32) {
    %c0_i32 = arith.constant 0 : i32
    %c0_i32_0 = arith.constant 0 : i32
    %c0_i32_1 = arith.constant 0 : i32
    return %c0_i32, %c0_i32_0 : i32, i32
  }
  func.func @transform_5(%arg0: i32) -> (i32, i32) {
    %c0_i32 = arith.constant 0 : i32
    %c0_i32_0 = arith.constant 0 : i32
    %c0_i32_1 = arith.constant 0 : i32
    return %c0_i32, %c0_i32_0 : i32, i32
  }
  func.func @transform_6(%arg0: i32) -> (i32, i32) {
    %c0_i32 = arith.constant 0 : i32
    %c0_i32_0 = arith.constant 0 : i32
    %c0_i32_1 = arith.constant 0 : i32
    return %c0_i32, %c0_i32_0 : i32, i32
  }
  func.func @transform_7(%arg0: i32) -> (i32, i32) {
    %c0_i32 = arith.constant 0 : i32
    %c0_i32_0 = arith.constant 0 : i32
    %c0_i32_1 = arith.constant 0 : i32
    return %c0_i32, %c0_i32_0 : i32, i32
  }
  func.func @transform_8(%arg0: i32) -> (i32, i32) {
    %c0_i32 = arith.constant 0 : i32
    %c0_i32_0 = arith.constant 0 : i32
    %c0_i32_1 = arith.constant 0 : i32
    return %c0_i32, %c0_i32_0 : i32, i32
  }
  func.func @transform_9(%arg0: i32) -> (i32, i32) {
    %c0_i32 = arith.constant 0 : i32
    %c0_i32_0 = arith.constant 0 : i32
    return %arg0, %c0_i32 : i32, i32
  }
}

</mosaic_0001>

<llo_original>
// kernel: tpu_custom_call.1
$region0: #{tpu_custom_call.1}
  #allocation0 [shape = 'u32[]', space=smem, size = 0x4, offset = 0x4, fixed_abs, tag = 'smem constant byte address 0x4 - core index']
  #allocation1 [shape = 'u32[144,128]{1,0:T(1,128)}', space=vmem, size = 0x12000, scoped, tag = 'internal scratch']
  %s0 = inlined_call_operand.vmem [shape: f32[48,128], index: 0, kind: input, shape index: {}]
  %s1 = inlined_call_operand.vmem [shape: f32[48,4], index: 1, kind: input, shape index: {}]
  %s2 = inlined_call_operand.hbm [shape: bf16[128,256], index: 2, kind: input, shape index: {}]
  %s3 = inlined_call_operand.vmem [shape: f32[4,256], index: 3, kind: input, shape index: {}]
  %s4 = inlined_call_operand.vmem [shape: f32[1,256], index: 4, kind: input, shape index: {}]
  %s5 = inlined_call_operand.hbm [shape: bf16[256,256], index: 5, kind: input, shape index: {}]
  %s6 = inlined_call_operand.vmem [shape: f32[1,256], index: 6, kind: input, shape index: {}]
  %s7 = inlined_call_operand.hbm [shape: bf16[256,128], index: 7, kind: input, shape index: {}]
  %s8 = inlined_call_operand.vmem [shape: f32[1,128], index: 8, kind: input, shape index: {}]
  %s9 = inlined_call_operand.hbm [shape: f32[48,128], index: 9, kind: output, shape index: {}]
  %s10 = sld [smem:[#allocation0]]
  $region81: #{tpu_custom_call.1} parent=0
    _
  %s12 = ssub.s32 1, %s10
  %s13 = scalar_select 0, %s12, %s10
  $region1: #{tpu_custom_call.1} parent=0
    #allocation2 [shape = 'u8[65536]{0}', space=vmem, size = 0x10000, scoped, tag = 'input window, operand 2, single buffered']
    #allocation3 [shape = 's32[2]{0}', space=sflag, size = 0x8, scoped, tag = 'scoped memory for tpu_custom_call.1']
    #allocation4 [shape = 's32[2]{0}', space=sflag, size = 0x8, scoped, tag = 'scoped memory for tpu_custom_call.1']
    #allocation5 [shape = 'u8[131072]{0}', space=vmem, size = 0x20000, scoped, tag = 'input window, operand 5, single buffered']
    #allocation6 [shape = 's32[1]{0}', space=sflag, size = 0x4, scoped, tag = 'scoped memory for tpu_custom_call.1']
    #allocation7 [shape = 'u8[65536]{0}', space=vmem, size = 0x10000, scoped, tag = 'input window, operand 7, single buffered']
    #allocation8 [shape = 'u8[24576]{0}', space=vmem, size = 0x6000, scoped, tag = 'output window, operand 0']
    %14 = vsyncpa [#allocation3], 0
    %15 = vsyncpa [#allocation6], 0
    %16 = vsyncpa [#allocation4], 0
    %s17 = scalar_lea.sflag [#allocation4], 1
    %18 = vsyncpa %s17, 0
    loop: start=0, step=1, limit=4
    $region2: #{tpu_custom_call.1} parent=1 // loop_pre_header
      _
    $region3: #{tpu_custom_call.1} parent=1 // loop_header
      %s20 = sphi 0, %s24
      %p21 = scmp.ge.s32.totalorder %s20, 4
      %s30 = sphi 0, %s32
      %s33 = sphi 0, %s30
      %s34 = sphi 0, %s33
      %s50 = sphi 0, %s34
      %s56 = sphi 0, %s58
      %s59 = sphi 0, %s56
      %s60 = sphi 0, %s59
      %s76 = sphi 0, %s60
      %s80 = sphi 0, %s80
      %s82 = sphi 0, %s80
      %s83 = sphi 0, %s82
      %s97 = sphi 0, %s83
      %s101 = sphi 0, %s101
      %s103 = sphi 0, %s101
      %s104 = sphi 0, %s103
      %s118 = sphi 0, %s104
      %s122 = sphi 0, %s122
      %s124 = sphi 0, %s122
      %s125 = sphi 0, %s124
      %s139 = sphi 0, %s125
      %s143 = sphi 0, %s143
      %s145 = sphi 0, %s143
      %s146 = sphi 0, %s145
      %s160 = sphi 0, %s146
      %s164 = sphi 0, %s164
      %s166 = sphi 0, %s164
      %s167 = sphi 0, %s166
      %s181 = sphi 0, %s167
      %s185 = sphi 0, %s185
      %s187 = sphi 0, %s185
      %s188 = sphi 0, %s187
      %s202 = sphi 0, %s188
      %s206 = sphi 0, %s206
      %s208 = sphi 0, %s206
      %s209 = sphi 0, %s208
      %s223 = sphi 0, %s209
      %s229 = sphi 0, %s231
      %s232 = sphi 0, %s229
      %s233 = sphi 0, %s232
      %s249 = sphi 0, %s233
    $region4: #{tpu_custom_call.1} parent=1 // loop_header_branch
      %23 = sbr.rel (%p21) target = $region8
    $region5: #{tpu_custom_call.1} parent=1 // loop_body
      %s25 = ssub.s32 %s20, 1
      %s26 = ssub.s32 %s20, 2
      %s27 = sadd.s32 %s20, 1
      %s28 = ssub.s32 %s20, %s27
      %p29 = scmp.eq.s32.totalorder %s28, 0
      %s31 = sadd.s32 %s30, 1
      %s32 = scalar_select %p29, %s30, %s31
      %p35 = pneg %p29
      %p36 = scmp.eq.s32.totalorder %s20, 1
      %p37 = por %p35, %p36
      %p38 = scmp.ne.s32.totalorder %s30, %s33
      %p39 = scmp.eq.s32.totalorder %s20, 0
      %p40 = por %p38, %p39
      %p41 = scmp.ne.s32.totalorder %s30, %s33
      %p42 = scmp.eq.s32.totalorder %s25, 1
      %p43 = por %p41, %p42
      %p44 = scmp.ne.s32.totalorder %s33, %s34
      %p45 = scmp.eq.s32.totalorder %s25, 0
      %p46 = por %p44, %p45
      %p47 = scmp.ne.s32.totalorder %s33, %s34
      %p48 = scmp.eq.s32.totalorder %s26, 1
      %p49 = por %p47, %p48
      %p51 = scmp.ne.s32.totalorder %s34, %s50
      %p52 = scmp.eq.s32.totalorder %s26, 0
      %p53 = por %p51, %p52
      %s54 = ssub.s32 %s20, %s27
      %p55 = scmp.eq.s32.totalorder %s54, 0
      %s57 = sadd.s32 %s56, 1
      %s58 = scalar_select %p55, %s56, %s57
      %p61 = pneg %p55
      %p62 = scmp.eq.s32.totalorder %s20, 1
      %p63 = por %p61, %p62
      %p64 = scmp.ne.s32.totalorder %s56, %s59
      %p65 = scmp.eq.s32.totalorder %s20, 0
      %p66 = por %p64, %p65
      %p67 = scmp.ne.s32.totalorder %s56, %s59
      %p68 = scmp.eq.s32.totalorder %s25, 1
      %p69 = por %p67, %p68
      %p70 = scmp.ne.s32.totalorder %s59, %s60
      %p71 = scmp.eq.s32.totalorder %s25, 0
      %p72 = por %p70, %p71
      %p73 = scmp.ne.s32.totalorder %s59, %s60
      %p74 = scmp.eq.s32.totalorder %s26, 1
      %p75 = por %p73, %p74
      %p77 = scmp.ne.s32.totalorder %s60, %s76
      %p78 = scmp.eq.s32.totalorder %s26, 0
      %p79 = por %p77, %p78
      %s81 = sadd.s32 %s80, 1
      %p84 = scmp.eq.s32.totalorder %s20, 1
      %p85 = scmp.ne.s32.totalorder %s80, %s82
      %p86 = scmp.eq.s32.totalorder %s20, 0
      %p87 = por %p85, %p86
      %p88 = scmp.ne.s32.totalorder %s80, %s82
      %p89 = scmp.eq.s32.totalorder %s25, 1
      %p90 = por %p88, %p89
      %p91 = scmp.ne.s32.totalorder %s82, %s83
      %p92 = scmp.eq.s32.totalorder %s25, 0
      %p93 = por %p91, %p92
      %p94 = scmp.ne.s32.totalorder %s82, %s83
      %p95 = scmp.eq.s32.totalorder %s26, 1
      %p96 = por %p94, %p95
      %p98 = scmp.ne.s32.totalorder %s83, %s97
      %p99 = scmp.eq.s32.totalorder %s26, 0
      %p100 = por %p98, %p99
      %s102 = sadd.s32 %s101, 1
      %p105 = scmp.eq.s32.totalorder %s20, 1
      %p106 = scmp.ne.s32.totalorder %s101, %s103
      %p107 = scmp.eq.s32.totalorder %s20, 0
      %p108 = por %p106, %p107
      %p109 = scmp.ne.s32.totalorder %s101, %s103
      %p110 = scmp.eq.s32.totalorder %s25, 1
      %p111 = por %p109, %p110
      %p112 = scmp.ne.s32.totalorder %s103, %s104
      %p113 = scmp.eq.s32.totalorder %s25, 0
      %p114 = por %p112, %p113
      %p115 = scmp.ne.s32.totalorder %s103, %s104
      %p116 = scmp.eq.s32.totalorder %s26, 1
      %p117 = por %p115, %p116
      %p119 = scmp.ne.s32.totalorder %s104, %s118
      %p120 = scmp.eq.s32.totalorder %s26, 0
      %p121 = por %p119, %p120
      %s123 = sadd.s32 %s122, 1
      %p126 = scmp.eq.s32.totalorder %s20, 1
      %p127 = scmp.ne.s32.totalorder %s122, %s124
      %p128 = scmp.eq.s32.totalorder %s20, 0
      %p129 = por %p127, %p128
      %p130 = scmp.ne.s32.totalorder %s122, %s124
      %p131 = scmp.eq.s32.totalorder %s25, 1
      %p132 = por %p130, %p131
      %p133 = scmp.ne.s32.totalorder %s124, %s125
      %p134 = scmp.eq.s32.totalorder %s25, 0
      %p135 = por %p133, %p134
      %p136 = scmp.ne.s32.totalorder %s124, %s125
      %p137 = scmp.eq.s32.totalorder %s26, 1
      %p138 = por %p136, %p137
      %p140 = scmp.ne.s32.totalorder %s125, %s139
      %p141 = scmp.eq.s32.totalorder %s26, 0
      %p142 = por %p140, %p141
      %s144 = sadd.s32 %s143, 1
      %p147 = scmp.eq.s32.totalorder %s20, 1
      %p148 = scmp.ne.s32.totalorder %s143, %s145
      %p149 = scmp.eq.s32.totalorder %s20, 0
      %p150 = por %p148, %p149
      %p151 = scmp.ne.s32.totalorder %s143, %s145
      %p152 = scmp.eq.s32.totalorder %s25, 1
      %p153 = por %p151, %p152
      %p154 = scmp.ne.s32.totalorder %s145, %s146
      %p155 = scmp.eq.s32.totalorder %s25, 0
      %p156 = por %p154, %p155
      %p157 = scmp.ne.s32.totalorder %s145, %s146
      %p158 = scmp.eq.s32.totalorder %s26, 1
      %p159 = por %p157, %p158
      %p161 = scmp.ne.s32.totalorder %s146, %s160
      %p162 = scmp.eq.s32.totalorder %s26, 0
      %p163 = por %p161, %p162
      %s165 = sadd.s32 %s164, 1
      %p168 = scmp.eq.s32.totalorder %s20, 1
      %p169 = scmp.ne.s32.totalorder %s164, %s166
      %p170 = scmp.eq.s32.totalorder %s20, 0
      %p171 = por %p169, %p170
      %p172 = scmp.ne.s32.totalorder %s164, %s166
      %p173 = scmp.eq.s32.totalorder %s25, 1
      %p174 = por %p172, %p173
      %p175 = scmp.ne.s32.totalorder %s166, %s167
      %p176 = scmp.eq.s32.totalorder %s25, 0
      %p177 = por %p175, %p176
      %p178 = scmp.ne.s32.totalorder %s166, %s167
      %p179 = scmp.eq.s32.totalorder %s26, 1
      %p180 = por %p178, %p179
      %p182 = scmp.ne.s32.totalorder %s167, %s181
      %p183 = scmp.eq.s32.totalorder %s26, 0
      %p184 = por %p182, %p183
      %s186 = sadd.s32 %s185, 1
      %p189 = scmp.eq.s32.totalorder %s20, 1
      %p190 = scmp.ne.s32.totalorder %s185, %s187
      %p191 = scmp.eq.s32.totalorder %s20, 0
      %p192 = por %p190, %p191
      %p193 = scmp.ne.s32.totalorder %s185, %s187
      %p194 = scmp.eq.s32.totalorder %s25, 1
      %p195 = por %p193, %p194
      %p196 = scmp.ne.s32.totalorder %s187, %s188
      %p197 = scmp.eq.s32.totalorder %s25, 0
      %p198 = por %p196, %p197
      %p199 = scmp.ne.s32.totalorder %s187, %s188
      %p200 = scmp.eq.s32.totalorder %s26, 1
      %p201 = por %p199, %p200
      %p203 = scmp.ne.s32.totalorder %s188, %s202
      %p204 = scmp.eq.s32.totalorder %s26, 0
      %p205 = por %p203, %p204
      %s207 = sadd.s32 %s206, 1
      %p210 = scmp.eq.s32.totalorder %s20, 1
      %p211 = scmp.ne.s32.totalorder %s206, %s208
      %p212 = scmp.eq.s32.totalorder %s20, 0
      %p213 = por %p211, %p212
      %p214 = scmp.ne.s32.totalorder %s206, %s208
      %p215 = scmp.eq.s32.totalorder %s25, 1
      %p216 = por %p214, %p215
      %p217 = scmp.ne.s32.totalorder %s208, %s209
      %p218 = scmp.eq.s32.totalorder %s25, 0
      %p219 = por %p217, %p218
      %p220 = scmp.ne.s32.totalorder %s208, %s209
      %p221 = scmp.eq.s32.totalorder %s26, 1
      %p222 = por %p220, %p221
      %p224 = scmp.ne.s32.totalorder %s209, %s223
      %p225 = scmp.eq.s32.totalorder %s26, 0
      %p226 = por %p224, %p225
      %s227 = ssub.s32 %s20, %s27
      %p228 = scmp.eq.s32.totalorder %s227, 0
      %s230 = sadd.s32 %s229, 1
      %s231 = scalar_select %p228, %s229, %s230
      %p234 = pneg %p228
      %p235 = scmp.eq.s32.totalorder %s20, 1
      %p236 = por %p234, %p235
      %p237 = scmp.ne.s32.totalorder %s229, %s232
      %p238 = scmp.eq.s32.totalorder %s20, 0
      %p239 = por %p237, %p238
      %p240 = scmp.ne.s32.totalorder %s229, %s232
      %p241 = scmp.eq.s32.totalorder %s25, 1
      %p242 = por %p240, %p241
      %p243 = scmp.ne.s32.totalorder %s232, %s233
      %p244 = scmp.eq.s32.totalorder %s25, 0
      %p245 = por %p243, %p244
      %p246 = scmp.ne.s32.totalorder %s232, %s233
      %p247 = scmp.eq.s32.totalorder %s26, 1
      %p248 = por %p246, %p247
      %p250 = scmp.ne.s32.totalorder %s233, %s249
      %p251 = scmp.eq.s32.totalorder %s26, 0
      %p252 = por %p250, %p251
      %p253 = scmp.le.s32.totalorder 1, %s20
      %p254 = scmp.lt.s32.totalorder %s20, 3
      %p255 = pnand %p253, %p254
      %p256 = pneg %p255
      // Predicated region
      $region9: #{tpu_custom_call.1} parent=5 // pred_check
        _
      $region10: #{tpu_custom_call.1} parent=5 // pred_check_branch
        %258 = sbr.rel (%p255) target = $region12
      $region11: #{tpu_custom_call.1} parent=5 // pred_region
        %s259 = ssub.s32 %s20, 1
        // Predicated region
        $region13: #{tpu_custom_call.1} parent=11 // pred_check
          %p260 = pneg %p93
        $region14: #{tpu_custom_call.1} parent=11 // pred_check_branch
          %262 = sbr.rel (%p260) target = $region16
        $region15: #{tpu_custom_call.1} parent=11 // pred_region
          %s264 = ssub.s32 2048, 2048
          %265 = vsyncadd [#allocation3], %s264
          %s266 = sshll.u32 [#allocation2], 4
          %s267 = int_to_ptr.vmem [resolvable:$true] %s266
          %272 = dma.hbm_to_vmem [thread:$0]  %s2, 2048, %s267, [#allocation3], 128, 128, 8
        $region16: #{tpu_custom_call.1} parent=11 // pred_fallthru
          _
        // Predicated region
        $region17: #{tpu_custom_call.1} parent=11 // pred_check
          %p273 = pneg %p114
        $region18: #{tpu_custom_call.1} parent=11 // pred_check_branch
          %275 = sbr.rel (%p273) target = $region20
        $region19: #{tpu_custom_call.1} parent=11 // pred_region
          _
        $region20: #{tpu_custom_call.1} parent=11 // pred_fallthru
          _
        // Predicated region
        $region21: #{tpu_custom_call.1} parent=11 // pred_check
          %p276 = pneg %p135
        $region22: #{tpu_custom_call.1} parent=11 // pred_check_branch
          %278 = sbr.rel (%p276) target = $region24
        $region23: #{tpu_custom_call.1} parent=11 // pred_region
          _
        $region24: #{tpu_custom_call.1} parent=11 // pred_fallthru
          _
        // Predicated region
        $region25: #{tpu_custom_call.1} parent=11 // pred_check
          %p279 = pneg %p156
        $region26: #{tpu_custom_call.1} parent=11 // pred_check_branch
          %281 = sbr.rel (%p279) target = $region28
        $region27: #{tpu_custom_call.1} parent=11 // pred_region
          %s283 = ssub.s32 4096, 4096
          %284 = vsyncadd [#allocation6], %s283
          %s285 = sshll.u32 [#allocation5], 4
          %s286 = int_to_ptr.vmem [resolvable:$true] %s285
          %291 = dma.hbm_to_vmem [thread:$0]  %s5, 4096, %s286, [#allocation6], 128, 128, 8
        $region28: #{tpu_custom_call.1} parent=11 // pred_fallthru
          _
        // Predicated region
        $region29: #{tpu_custom_call.1} parent=11 // pred_check
          %p292 = pneg %p177
        $region30: #{tpu_custom_call.1} parent=11 // pred_check_branch
          %294 = sbr.rel (%p292) target = $region32
        $region31: #{tpu_custom_call.1} parent=11 // pred_region
          _
        $region32: #{tpu_custom_call.1} parent=11 // pred_fallthru
          _
        // Predicated region
        $region33: #{tpu_custom_call.1} parent=11 // pred_check
          %p295 = pneg %p198
        $region34: #{tpu_custom_call.1} parent=11 // pred_check_branch
          %297 = sbr.rel (%p295) target = $region36
        $region35: #{tpu_custom_call.1} parent=11 // pred_region
          %s299 = ssub.s32 2048, 2048
          %300 = vsyncadd [#allocation6], %s299
          %s301 = sshll.u32 [#allocation7], 4
          %s302 = int_to_ptr.vmem [resolvable:$true] %s301
          %307 = dma.hbm_to_vmem [thread:$0]  %s7, 2048, %s302, [#allocation6], 64, 64, 4
        $region36: #{tpu_custom_call.1} parent=11 // pred_fallthru
          _
        // Predicated region
        $region37: #{tpu_custom_call.1} parent=11 // pred_check
          %p308 = pneg %p219
        $region38: #{tpu_custom_call.1} parent=11 // pred_check_branch
          %310 = sbr.rel (%p308) target = $region40
        $region39: #{tpu_custom_call.1} parent=11 // pred_region
          _
        $region40: #{tpu_custom_call.1} parent=11 // pred_fallthru
          _
      $region12: #{tpu_custom_call.1} parent=5 // pred_fallthru
        _
      %p311 = scmp.lt.s32.totalorder %s20, 2
      // Predicated region
      $region41: #{tpu_custom_call.1} parent=5 // pred_check
        %p312 = pneg %p311
      $region42: #{tpu_custom_call.1} parent=5 // pred_check_branch
        %314 = sbr.rel (%p312) target = $region44
      $region43: #{tpu_custom_call.1} parent=5 // pred_region
        // Predicated region
        $region45: #{tpu_custom_call.1} parent=43 // pred_check
          %p315 = pneg %p40
        $region46: #{tpu_custom_call.1} parent=43 // pred_check_branch
          %317 = sbr.rel (%p315) target = $region48
        $region47: #{tpu_custom_call.1} parent=43 // pred_region
          %s318 = smul.u32 3, %s20
          %p319 = scmp.lt.s32.totalorder %s318, 5
          %s320 = scalar_select %p319, %s318, 5
          %s321 = smul.addr %s320, 8
          %s322 = scalar_lea.vmem %s0, %s321
          %s323 = smul.u32 3, %s20
        $region48: #{tpu_custom_call.1} parent=43 // pred_fallthru
          _
        // Predicated region
        $region49: #{tpu_custom_call.1} parent=43 // pred_check
          %p324 = pneg %p66
        $region50: #{tpu_custom_call.1} parent=43 // pred_check_branch
          %326 = sbr.rel (%p324) target = $region52
        $region51: #{tpu_custom_call.1} parent=43 // pred_region
          %s327 = smul.u32 3, %s20
          %p328 = scmp.lt.s32.totalorder %s327, 5
          %s329 = scalar_select %p328, %s327, 5
          %s330 = smul.addr %s329, 8
          %s331 = scalar_lea.vmem %s1, %s330
          %s332 = smul.u32 3, %s20
        $region52: #{tpu_custom_call.1} parent=43 // pred_fallthru
          _
      $region44: #{tpu_custom_call.1} parent=5 // pred_fallthru
        _
      %p333 = scmp.le.s32.totalorder 1, %s20
      %p334 = scmp.lt.s32.totalorder %s20, 3
      %p335 = pnand %p333, %p334
      %p336 = pneg %p335
      // Predicated region
      $region53: #{tpu_custom_call.1} parent=5 // pred_check
        _
      $region54: #{tpu_custom_call.1} parent=5 // pred_check_branch
        %338 = sbr.rel (%p335) target = $region56
      $region55: #{tpu_custom_call.1} parent=5 // pred_region
        %s339 = ssub.s32 %s20, 1
        // Predicated region
        $region57: #{tpu_custom_call.1} parent=55 // pred_check
          %p340 = pneg %p93
        $region58: #{tpu_custom_call.1} parent=55 // pred_check_branch
          %342 = sbr.rel (%p340) target = $region60
        $region59: #{tpu_custom_call.1} parent=55 // pred_region
          %343 = dma.done [#allocation3], 2048
        $region60: #{tpu_custom_call.1} parent=55 // pred_fallthru
          _
        // Predicated region
        $region61: #{tpu_custom_call.1} parent=55 // pred_check
          %p344 = pneg %p156
        $region62: #{tpu_custom_call.1} parent=55 // pred_check_branch
          %346 = sbr.rel (%p344) target = $region64
        $region63: #{tpu_custom_call.1} parent=55 // pred_region
          %347 = dma.done [#allocation6], 4096
        $region64: #{tpu_custom_call.1} parent=55 // pred_fallthru
          _
        // Predicated region
        $region65: #{tpu_custom_call.1} parent=55 // pred_check
          %p348 = pneg %p198
        $region66: #{tpu_custom_call.1} parent=55 // pred_check_branch
          %350 = sbr.rel (%p348) target = $region68
        $region67: #{tpu_custom_call.1} parent=55 // pred_region
          %351 = dma.done [#allocation6], 2048
        $region68: #{tpu_custom_call.1} parent=55 // pred_fallthru
          _
        %s352 = smul.u32 3, %s25
        %p353 = scmp.lt.s32.totalorder %s352, 5
        %s354 = scalar_select %p353, %s352, 5
        %s355 = smul.addr %s354, 8
        %s356 = scalar_lea.vmem %s0, %s355
        %p357 = pneg %p46
        %p358 = pneg %p43
        %s359 = smul.u32 3, %s25
        %p360 = scmp.lt.s32.totalorder %s359, 5
        %s361 = scalar_select %p360, %s359, 5
        %s362 = smul.addr %s361, 8
        %s363 = scalar_lea.vmem %s1, %s362
        %p364 = pneg %p72
        %p365 = pneg %p69
        %p366 = pneg %p93
        %p367 = pneg %p90
        %p368 = pneg %p114
        %p369 = pneg %p111
        %p370 = pneg %p135
        %p371 = pneg %p132
        %p372 = pneg %p156
        %p373 = pneg %p153
        %p374 = pneg %p177
        %p375 = pneg %p174
        %p376 = pneg %p198
        %p377 = pneg %p195
        %p378 = pneg %p219
        %p379 = pneg %p216
        %p380 = pneg %p245
        %p381 = pneg %p242
        %s382 = sand.u32 %s232, 1
        %s383 = scalar_lea.sflag [#allocation4], %s382
        %s384 = sand.u32 %s232, 1
        %s385 = smul.addr %s384, 24
        %s386 = scalar_lea.vmem [#allocation8], %s385
        %s387 = smul.u32 3, %s25
        %p388 = scmp.lt.s32.totalorder %s387, 5
        %s389 = scalar_select %p388, %s387, 5
        %s390 = smul.addr %s389, 8
        %s391 = scalar_lea.vmem %s0, %s390
        %s392 = smul.u32 3, %s25
        %s393 = smul.u32 3, %s25
        %p394 = scmp.lt.s32.totalorder %s393, 5
        %s395 = scalar_select %p394, %s393, 5
        %s396 = smul.addr %s395, 8
        %s397 = scalar_lea.vmem %s1, %s396
        %s398 = smul.u32 3, %s25
        %s399 = smul.u32 3, %s25
        %v401 = vld [vmem:[%s391] sm:$0xff]
        %v402 = vld [vmem:[%s391 + $0x8] sm:$0xff]
        %v403 = vld [vmem:[%s391 + $0x10] sm:$0xff]
        %v404 = vpack.c.bf16 %v402, %v401
        %v405 = vpack.c.bf16 %v403, %v403
        %v406 = vld [vmem:[#allocation2] sm:$0xff]
        %v407 = vld [vmem:[#allocation2 + $0x8] sm:$0xff]
        %v408 = vld [vmem:[#allocation2 + $0x10] sm:$0xff]
        %v409 = vld [vmem:[#allocation2 + $0x18] sm:$0xff]
        %v410 = vld [vmem:[#allocation2 + $0x20] sm:$0xff]
        %v411 = vld [vmem:[#allocation2 + $0x28] sm:$0xff]
        %v412 = vld [vmem:[#allocation2 + $0x30] sm:$0xff]
        %v413 = vld [vmem:[#allocation2 + $0x38] sm:$0xff]
        %v414 = vld [vmem:[#allocation2 + $0x40] sm:$0xff]
        %v415 = vld [vmem:[#allocation2 + $0x48] sm:$0xff]
        %v416 = vld [vmem:[#allocation2 + $0x50] sm:$0xff]
        %v417 = vld [vmem:[#allocation2 + $0x58] sm:$0xff]
        %v418 = vld [vmem:[#allocation2 + $0x60] sm:$0xff]
        %v419 = vld [vmem:[#allocation2 + $0x68] sm:$0xff]
        %v420 = vld [vmem:[#allocation2 + $0x70] sm:$0xff]
        %v421 = vld [vmem:[#allocation2 + $0x78] sm:$0xff]
        %v422 = vld [vmem:[%s397] sm:$0xff]
        %v423 = vld [vmem:[%s397 + $0x8] sm:$0xff]
        %v424 = vld [vmem:[%s397 + $0x10] sm:$0xff]
        %v425 = vld [vmem:[%s3] sm:$0xff]
        %427 = vset.pattern.permute.xlu0 0
        %428 = vperm.xlu0 %427, %v422
        %v429 = vpop.permute.xlu0 %428
        %432 = vset.pattern.permute.xlu0 0
        %433 = vperm.xlu0 %432, %v423
        %v434 = vpop.permute.xlu0 %433
        %437 = vset.pattern.permute.xlu0 0
        %438 = vperm.xlu0 %437, %v424
        %v439 = vpop.permute.xlu0 %438
        %v442 = vlaneseq
        %v443 = vshrl.u32 %v442, 7
        %v444 = vsub.s32 0, %v443
        %v445 = vrot.slane %v425, %v444
        %v446 = vlaneseq
        %v447 = vshrl.u32 %v446, 7
        %v448 = vsub.s32 4, %v447
        %v449 = vrot.slane %v425, %v448
        %v452 = vlaneseq
        %v453 = vshrl.u32 %v452, 7
        %v454 = vsub.s32 0, %v453
        %v455 = vrot.slane %v445, %v454
        %v456 = vlaneseq
        %v457 = vshrl.u32 %v456, 7
        %v458 = vsub.s32 0, %v457
        %v459 = vrot.slane %v449, %v458
        %v460 = vmul.f32 %v429, %v455
        %v461 = vmul.f32 %v429, %v459
        %v462 = vmul.f32 %v434, %v455
        %v463 = vmul.f32 %v434, %v459
        %v464 = vmul.f32 %v439, %v455
        %v465 = vmul.f32 %v439, %v459
        %v482 = vunpack.c.l.b16 %v406
        %v483 = vunpack.c.h.b16 %v406
        %v484 = vunpack.c.l.b16 %v407
        %v485 = vunpack.c.h.b16 %v407
        %v486 = vunpack.c.l.b16 %v408
        %v487 = vunpack.c.h.b16 %v408
        %v488 = vunpack.c.l.b16 %v409
        %v489 = vunpack.c.h.b16 %v409
        %v490 = vunpack.c.l.b16 %v410
        %v491 = vunpack.c.h.b16 %v410
        %v492 = vunpack.c.l.b16 %v411
        %v493 = vunpack.c.h.b16 %v411
        %v494 = vunpack.c.l.b16 %v412
        %v495 = vunpack.c.h.b16 %v412
        %v496 = vunpack.c.l.b16 %v413
        %v497 = vunpack.c.h.b16 %v413
        %v498 = vunpack.c.l.b16 %v414
        %v499 = vunpack.c.h.b16 %v414
        %v500 = vunpack.c.l.b16 %v415
        %v501 = vunpack.c.h.b16 %v415
        %v502 = vunpack.c.l.b16 %v416
        %v503 = vunpack.c.h.b16 %v416
        %v504 = vunpack.c.l.b16 %v417
        %v505 = vunpack.c.h.b16 %v417
        %v506 = vunpack.c.l.b16 %v418
        %v507 = vunpack.c.h.b16 %v418
        %v508 = vunpack.c.l.b16 %v419
        %v509 = vunpack.c.h.b16 %v419
        %v510 = vunpack.c.l.b16 %v420
        %v511 = vunpack.c.h.b16 %v420
        %v512 = vunpack.c.l.b16 %v421
        %v513 = vunpack.c.h.b16 %v421
        %v514 = vpack.c.b16 %v484, %v482
        %v515 = vpack.c.b16 %v485, %v483
        %v516 = vpack.c.b16 %v488, %v486
        %v517 = vpack.c.b16 %v489, %v487
        %v518 = vpack.c.b16 %v492, %v490
        %v519 = vpack.c.b16 %v493, %v491
        %v520 = vpack.c.b16 %v496, %v494
        %v521 = vpack.c.b16 %v497, %v495
        %v522 = vpack.c.b16 %v500, %v498
        %v523 = vpack.c.b16 %v501, %v499
        %v524 = vpack.c.b16 %v504, %v502
        %v525 = vpack.c.b16 %v505, %v503
        %v526 = vpack.c.b16 %v508, %v506
        %v527 = vpack.c.b16 %v509, %v507
        %v528 = vpack.c.b16 %v512, %v510
        %v529 = vpack.c.b16 %v513, %v511
        %546 = vmatprep.subr.bf16.mxu0 %v515
        %547 = vmatpush1.bf16.msra.mxu0 %v514
        %548 = vmatprep.subr.bf16.mxu0 %v517
        %549 = vmatpush1.bf16.msra.mxu0 %v516
        %550 = vmatprep.subr.bf16.mxu0 %v519
        %551 = vmatpush1.bf16.msra.mxu0 %v518
        %552 = vmatprep.subr.bf16.mxu0 %v521
        %553 = vmatpush1.bf16.msra.mxu0 %v520
        %554 = vmatprep.subr.bf16.mxu0 %v523
        %555 = vmatpush1.bf16.msra.mxu0 %v522
        %556 = vmatprep.subr.bf16.mxu0 %v525
        %557 = vmatpush1.bf16.msra.mxu0 %v524
        %558 = vmatprep.subr.bf16.mxu0 %v527
        %559 = vmatpush1.bf16.msra.mxu0 %v526
        %560 = vmatprep.subr.bf16.mxu0 %v529
        %561 = vmatpush1.bf16.msra.mxu0 %v528
        %562 = vmatprep.subr.bf16.mxu0 0
        %563 = vmatpush1.bf16.msra.mxu0 0
        %564 = vmatprep.subr.bf16.mxu0 0
        %565 = vmatpush1.bf16.msra.mxu0 0
        %566 = vmatprep.subr.bf16.mxu0 0
        %567 = vmatpush1.bf16.msra.mxu0 0
        %568 = vmatprep.subr.bf16.mxu0 0
        %569 = vmatpush1.bf16.msra.mxu0 0
        %570 = vmatprep.subr.bf16.mxu0 0
        %571 = vmatpush1.bf16.msra.mxu0 0
        %572 = vmatprep.subr.bf16.mxu0 0
        %573 = vmatpush1.bf16.msra.mxu0 0
        %574 = vmatprep.subr.bf16.mxu0 0
        %575 = vmatpush1.bf16.msra.mxu0 0
        %576 = vmatprep.subr.bf16.mxu0 0
        %577 = vmatpush1.bf16.msra.mxu0 0
        %578 = vmatprep.mubr.bf16.mxu0 0
        %579 = vmatmul.mubr.bf16.gmra.mrb[0].mxu0 %v404
        %v580 = vpop.f32.mrb[0].mxu0
        %v581 = vadd.f32 %v460, %v580
        %v582 = vpop.f32.mrb[0].mxu0
        %v583 = vadd.f32 %v461, %v582
        %v584 = vpop.f32.mrb[0].mxu0
        %v585 = vadd.f32 %v462, %v584
        %v586 = vpop.f32.mrb[0].mxu0
        %v587 = vadd.f32 %v463, %v586
        %588 = vmatprep.mubr.bf16.mxu0 0
        %589 = vmatmul.mubr.bf16.gmra.mrb[0].mxu0 %v405
        %v590 = vpop.f32.mrb[0].mxu0
        %v591 = vadd.f32 %v464, %v590
        %v592 = vpop.f32.mrb[0].mxu0
        %v593 = vadd.f32 %v465, %v592
        %v594 = vpop.f32.mrb[0].mxu0
        %v595 = vpop.f32.mrb[0].mxu0
        %596 = vdwg.mxu0
        %597 = vset.pattern.permute.xlu0 1
        %598 = vperm.xlu0 %597, %v422
        %v599 = vpop.permute.xlu0 %598
        %601 = vset.pattern.permute.xlu0 1
        %602 = vperm.xlu0 %601, %v423
        %v603 = vpop.permute.xlu0 %602
        %605 = vset.pattern.permute.xlu0 1
        %606 = vperm.xlu0 %605, %v424
        %v607 = vpop.permute.xlu0 %606
        %v609 = vlaneseq
        %v610 = vshrl.u32 %v609, 7
        %v611 = vsub.s32 1, %v610
        %v612 = vrot.slane %v425, %v611
        %v613 = vlaneseq
        %v614 = vshrl.u32 %v613, 7
        %v615 = vsub.s32 5, %v614
        %v616 = vrot.slane %v425, %v615
        %v619 = vlaneseq
        %v620 = vshrl.u32 %v619, 7
        %v621 = vsub.s32 1, %v620
        %v622 = vrot.slane %v612, %v621
        %v623 = vlaneseq
        %v624 = vshrl.u32 %v623, 7
        %v625 = vsub.s32 1, %v624
        %v626 = vrot.slane %v616, %v625
        %v627 = vmul.f32 %v599, %v622
        %v628 = vmul.f32 %v599, %v626
        %v629 = vmul.f32 %v603, %v622
        %v630 = vmul.f32 %v603, %v626
        %v631 = vmul.f32 %v607, %v622
        %v632 = vmul.f32 %v607, %v626
        %v633 = vadd.f32 %v581, %v627
        %v634 = vadd.f32 %v583, %v628
        %v635 = vadd.f32 %v585, %v629
        %v636 = vadd.f32 %v587, %v630
        %v637 = vadd.f32 %v591, %v631
        %v638 = vadd.f32 %v593, %v632
        %639 = vset.pattern.permute.xlu0 2
        %640 = vperm.xlu0 %639, %v422
        %v641 = vpop.permute.xlu0 %640
        %643 = vset.pattern.permute.xlu0 2
        %644 = vperm.xlu0 %643, %v423
        %v645 = vpop.permute.xlu0 %644
        %647 = vset.pattern.permute.xlu0 2
        %648 = vperm.xlu0 %647, %v424
        %v649 = vpop.permute.xlu0 %648
        %v651 = vlaneseq
        %v652 = vshrl.u32 %v651, 7
        %v653 = vsub.s32 2, %v652
        %v654 = vrot.slane %v425, %v653
        %v655 = vlaneseq
        %v656 = vshrl.u32 %v655, 7
        %v657 = vsub.s32 6, %v656
        %v658 = vrot.slane %v425, %v657
        %v661 = vlaneseq
        %v662 = vshrl.u32 %v661, 7
        %v663 = vsub.s32 2, %v662
        %v664 = vrot.slane %v654, %v663
        %v665 = vlaneseq
        %v666 = vshrl.u32 %v665, 7
        %v667 = vsub.s32 2, %v666
        %v668 = vrot.slane %v658, %v667
        %v669 = vmul.f32 %v641, %v664
        %v670 = vmul.f32 %v641, %v668
        %v671 = vmul.f32 %v645, %v664
        %v672 = vmul.f32 %v645, %v668
        %v673 = vmul.f32 %v649, %v664
        %v674 = vmul.f32 %v649, %v668
        %v675 = vadd.f32 %v633, %v669
        %v676 = vadd.f32 %v634, %v670
        %v677 = vadd.f32 %v635, %v671
        %v678 = vadd.f32 %v636, %v672
        %v679 = vadd.f32 %v637, %v673
        %v680 = vadd.f32 %v638, %v674
        %681 = vset.pattern.permute.xlu0 3
        %682 = vperm.xlu0 %681, %v422
        %v683 = vpop.permute.xlu0 %682
        %685 = vset.pattern.permute.xlu0 3
        %686 = vperm.xlu0 %685, %v423
        %v687 = vpop.permute.xlu0 %686
        %689 = vset.pattern.permute.xlu0 3
        %690 = vperm.xlu0 %689, %v424
        %v691 = vpop.permute.xlu0 %690
        %v693 = vlaneseq
        %v694 = vshrl.u32 %v693, 7
        %v695 = vsub.s32 3, %v694
        %v696 = vrot.slane %v425, %v695
        %v697 = vlaneseq
        %v698 = vshrl.u32 %v697, 7
        %v699 = vsub.s32 7, %v698
        %v700 = vrot.slane %v425, %v699
        %v703 = vlaneseq
        %v704 = vshrl.u32 %v703, 7
        %v705 = vsub.s32 3, %v704
        %v706 = vrot.slane %v696, %v705
        %v707 = vlaneseq
        %v708 = vshrl.u32 %v707, 7
        %v709 = vsub.s32 3, %v708
        %v710 = vrot.slane %v700, %v709
        %v711 = vmul.f32 %v683, %v706
        %v712 = vmul.f32 %v683, %v710
        %v713 = vmul.f32 %v687, %v706
        %v714 = vmul.f32 %v687, %v710
        %v715 = vmul.f32 %v691, %v706
        %v716 = vmul.f32 %v691, %v710
        %v717 = vadd.f32 %v675, %v711
        %v718 = vadd.f32 %v676, %v712
        %v719 = vadd.f32 %v677, %v713
        %v720 = vadd.f32 %v678, %v714
        %v721 = vadd.f32 %v679, %v715
        %v722 = vadd.f32 %v680, %v716
        %v723 = vld [vmem:[%s4] sm:$0x3]
        %v725 = vlaneseq
        %v726 = vshrl.u32 %v725, 7
        %v727 = vsub.s32 0, %v726
        %v728 = vrot.slane %v723, %v727
        %v729 = vlaneseq
        %v730 = vshrl.u32 %v729, 7
        %v731 = vsub.s32 1, %v730
        %v732 = vrot.slane %v723, %v731
        %v735 = vadd.f32 %v717, %v728
        %v736 = vadd.f32 %v718, %v732
        %v737 = vadd.f32 %v719, %v728
        %v738 = vadd.f32 %v720, %v732
        %v739 = vadd.f32 %v721, %v728
        %v740 = vadd.f32 %v722, %v732
        %v741 = vmax.f32 %v735, 0.0
        %v742 = vmax.f32 %v736, 0.0
        %v743 = vmax.f32 %v737, 0.0
        %v744 = vmax.f32 %v738, 0.0
        %v745 = vmax.f32 %v739, 0.0
        %v746 = vmax.f32 %v740, 0.0
        %v747 = vpack.c.bf16 %v743, %v741
        %v748 = vpack.c.bf16 %v744, %v742
        %v749 = vpack.c.bf16 %v745, %v745
        %v750 = vpack.c.bf16 %v746, %v746
        %v751 = vld [vmem:[#allocation5] sm:$0xff]
        %v752 = vld [vmem:[#allocation5 + $0x8] sm:$0xff]
        %v753 = vld [vmem:[#allocation5 + $0x10] sm:$0xff]
        %v754 = vld [vmem:[#allocation5 + $0x18] sm:$0xff]
        %v755 = vld [vmem:[#allocation5 + $0x20] sm:$0xff]
        %v756 = vld [vmem:[#allocation5 + $0x28] sm:$0xff]
        %v757 = vld [vmem:[#allocation5 + $0x30] sm:$0xff]
        %v758 = vld [vmem:[#allocation5 + $0x38] sm:$0xff]
        %v759 = vld [vmem:[#allocation5 + $0x40] sm:$0xff]
        %v760 = vld [vmem:[#allocation5 + $0x48] sm:$0xff]
        %v761 = vld [vmem:[#allocation5 + $0x50] sm:$0xff]
        %v762 = vld [vmem:[#allocation5 + $0x58] sm:$0xff]
        %v763 = vld [vmem:[#allocation5 + $0x60] sm:$0xff]
        %v764 = vld [vmem:[#allocation5 + $0x68] sm:$0xff]
        %v765 = vld [vmem:[#allocation5 + $0x70] sm:$0xff]
        %v766 = vld [vmem:[#allocation5 + $0x78] sm:$0xff]
        %v767 = vld [vmem:[#allocation5 + $0x80] sm:$0xff]
        %v768 = vld [vmem:[#allocation5 + $0x88] sm:$0xff]
        %v769 = vld [vmem:[#allocation5 + $0x90] sm:$0xff]
        %v770 = vld [vmem:[#allocation5 + $0x98] sm:$0xff]
        %v771 = vld [vmem:[#allocation5 + $0xa0] sm:$0xff]
        %v772 = vld [vmem:[#allocation5 + $0xa8] sm:$0xff]
        %v773 = vld [vmem:[#allocation5 + $0xb0] sm:$0xff]
        %v774 = vld [vmem:[#allocation5 + $0xb8] sm:$0xff]
        %v775 = vld [vmem:[#allocation5 + $0xc0] sm:$0xff]
        %v776 = vld [vmem:[#allocation5 + $0xc8] sm:$0xff]
        %v777 = vld [vmem:[#allocation5 + $0xd0] sm:$0xff]
        %v778 = vld [vmem:[#allocation5 + $0xd8] sm:$0xff]
        %v779 = vld [vmem:[#allocation5 + $0xe0] sm:$0xff]
        %v780 = vld [vmem:[#allocation5 + $0xe8] sm:$0xff]
        %v781 = vld [vmem:[#allocation5 + $0xf0] sm:$0xff]
        %v782 = vld [vmem:[#allocation5 + $0xf8] sm:$0xff]
        %v783 = vld [vmem:[%s6] sm:$0x3]
        %v785 = vlaneseq
        %v786 = vshrl.u32 %v785, 7
        %v787 = vsub.s32 0, %v786
        %v788 = vrot.slane %v783, %v787
        %v789 = vlaneseq
        %v790 = vshrl.u32 %v789, 7
        %v791 = vsub.s32 1, %v790
        %v792 = vrot.slane %v783, %v791
        %v827 = vunpack.c.l.b16 %v751
        %v828 = vunpack.c.h.b16 %v751
        %v829 = vunpack.c.l.b16 %v752
        %v830 = vunpack.c.h.b16 %v752
        %v831 = vunpack.c.l.b16 %v753
        %v832 = vunpack.c.h.b16 %v753
        %v833 = vunpack.c.l.b16 %v754
        %v834 = vunpack.c.h.b16 %v754
        %v835 = vunpack.c.l.b16 %v755
        %v836 = vunpack.c.h.b16 %v755
        %v837 = vunpack.c.l.b16 %v756
        %v838 = vunpack.c.h.b16 %v756
        %v839 = vunpack.c.l.b16 %v757
        %v840 = vunpack.c.h.b16 %v757
        %v841 = vunpack.c.l.b16 %v758
        %v842 = vunpack.c.h.b16 %v758
        %v843 = vunpack.c.l.b16 %v759
        %v844 = vunpack.c.h.b16 %v759
        %v845 = vunpack.c.l.b16 %v760
        %v846 = vunpack.c.h.b16 %v760
        %v847 = vunpack.c.l.b16 %v761
        %v848 = vunpack.c.h.b16 %v761
        %v849 = vunpack.c.l.b16 %v762
        %v850 = vunpack.c.h.b16 %v762
        %v851 = vunpack.c.l.b16 %v763
        %v852 = vunpack.c.h.b16 %v763
        %v853 = vunpack.c.l.b16 %v764
        %v854 = vunpack.c.h.b16 %v764
        %v855 = vunpack.c.l.b16 %v765
        %v856 = vunpack.c.h.b16 %v765
        %v857 = vunpack.c.l.b16 %v766
        %v858 = vunpack.c.h.b16 %v766
        %v859 = vunpack.c.l.b16 %v767
        %v860 = vunpack.c.h.b16 %v767
        %v861 = vunpack.c.l.b16 %v768
        %v862 = vunpack.c.h.b16 %v768
        %v863 = vunpack.c.l.b16 %v769
        %v864 = vunpack.c.h.b16 %v769
        %v865 = vunpack.c.l.b16 %v770
        %v866 = vunpack.c.h.b16 %v770
        %v867 = vunpack.c.l.b16 %v771
        %v868 = vunpack.c.h.b16 %v771
        %v869 = vunpack.c.l.b16 %v772
        %v870 = vunpack.c.h.b16 %v772
        %v871 = vunpack.c.l.b16 %v773
        %v872 = vunpack.c.h.b16 %v773
        %v873 = vunpack.c.l.b16 %v774
        %v874 = vunpack.c.h.b16 %v774
        %v875 = vunpack.c.l.b16 %v775
        %v876 = vunpack.c.h.b16 %v775
        %v877 = vunpack.c.l.b16 %v776
        %v878 = vunpack.c.h.b16 %v776
        %v879 = vunpack.c.l.b16 %v777
        %v880 = vunpack.c.h.b16 %v777
        %v881 = vunpack.c.l.b16 %v778
        %v882 = vunpack.c.h.b16 %v778
        %v883 = vunpack.c.l.b16 %v779
        %v884 = vunpack.c.h.b16 %v779
        %v885 = vunpack.c.l.b16 %v780
        %v886 = vunpack.c.h.b16 %v780
        %v887 = vunpack.c.l.b16 %v781
        %v888 = vunpack.c.h.b16 %v781
        %v889 = vunpack.c.l.b16 %v782
        %v890 = vunpack.c.h.b16 %v782
        %v891 = vpack.c.b16 %v829, %v827
        %v892 = vpack.c.b16 %v830, %v828
        %v893 = vpack.c.b16 %v833, %v831
        %v894 = vpack.c.b16 %v834, %v832
        %v895 = vpack.c.b16 %v837, %v835
        %v896 = vpack.c.b16 %v838, %v836
        %v897 = vpack.c.b16 %v841, %v839
        %v898 = vpack.c.b16 %v842, %v840
        %v899 = vpack.c.b16 %v845, %v843
        %v900 = vpack.c.b16 %v846, %v844
        %v901 = vpack.c.b16 %v849, %v847
        %v902 = vpack.c.b16 %v850, %v848
        %v903 = vpack.c.b16 %v853, %v851
        %v904 = vpack.c.b16 %v854, %v852
        %v905 = vpack.c.b16 %v857, %v855
        %v906 = vpack.c.b16 %v858, %v856
        %v907 = vpack.c.b16 %v861, %v859
        %v908 = vpack.c.b16 %v862, %v860
        %v909 = vpack.c.b16 %v865, %v863
        %v910 = vpack.c.b16 %v866, %v864
        %v911 = vpack.c.b16 %v869, %v867
        %v912 = vpack.c.b16 %v870, %v868
        %v913 = vpack.c.b16 %v873, %v871
        %v914 = vpack.c.b16 %v874, %v872
        %v915 = vpack.c.b16 %v877, %v875
        %v916 = vpack.c.b16 %v878, %v876
        %v917 = vpack.c.b16 %v881, %v879
        %v918 = vpack.c.b16 %v882, %v880
        %v919 = vpack.c.b16 %v885, %v883
        %v920 = vpack.c.b16 %v886, %v884
        %v921 = vpack.c.b16 %v889, %v887
        %v922 = vpack.c.b16 %v890, %v888
        %955 = vmatprep.subr.bf16.mxu0 %v892
        %956 = vmatpush1.bf16.msra.mxu0 %v891
        %957 = vmatprep.subr.bf16.mxu0 %v894
        %958 = vmatpush1.bf16.msra.mxu0 %v893
        %959 = vmatprep.subr.bf16.mxu0 %v896
        %960 = vmatpush1.bf16.msra.mxu0 %v895
        %961 = vmatprep.subr.bf16.mxu0 %v898
        %962 = vmatpush1.bf16.msra.mxu0 %v897
        %963 = vmatprep.subr.bf16.mxu0 %v900
        %964 = vmatpush1.bf16.msra.mxu0 %v899
        %965 = vmatprep.subr.bf16.mxu0 %v902
        %966 = vmatpush1.bf16.msra.mxu0 %v901
        %967 = vmatprep.subr.bf16.mxu0 %v904
        %968 = vmatpush1.bf16.msra.mxu0 %v903
        %969 = vmatprep.subr.bf16.mxu0 %v906
        %970 = vmatpush1.bf16.msra.mxu0 %v905
        %971 = vmatprep.subr.bf16.mxu0 %v908
        %972 = vmatpush1.bf16.msra.mxu0 %v907
        %973 = vmatprep.subr.bf16.mxu0 %v910
        %974 = vmatpush1.bf16.msra.mxu0 %v909
        %975 = vmatprep.subr.bf16.mxu0 %v912
        %976 = vmatpush1.bf16.msra.mxu0 %v911
        %977 = vmatprep.subr.bf16.mxu0 %v914
        %978 = vmatpush1.bf16.msra.mxu0 %v913
        %979 = vmatprep.subr.bf16.mxu0 %v916
        %980 = vmatpush1.bf16.msra.mxu0 %v915
        %981 = vmatprep.subr.bf16.mxu0 %v918
        %982 = vmatpush1.bf16.msra.mxu0 %v917
        %983 = vmatprep.subr.bf16.mxu0 %v920
        %984 = vmatpush1.bf16.msra.mxu0 %v919
        %985 = vmatprep.subr.bf16.mxu0 %v922
        %986 = vmatpush1.bf16.msra.mxu0 %v921
        %987 = vmatprep.mubr.bf16.mxu0 %v748
        %988 = vmatmul.mubr.bf16.gmra.mrb[0].mxu0 %v747
        %v989 = vpop.f32.mrb[0].mxu0
        %v990 = vadd.f32 %v788, %v989
        %v991 = vpop.f32.mrb[0].mxu0
        %v992 = vadd.f32 %v792, %v991
        %v993 = vpop.f32.mrb[0].mxu0
        %v994 = vadd.f32 %v788, %v993
        %v995 = vpop.f32.mrb[0].mxu0
        %v996 = vadd.f32 %v792, %v995
        %997 = vmatprep.mubr.bf16.mxu0 %v750
        %998 = vmatmul.mubr.bf16.gmra.mrb[0].mxu0 %v749
        %v999 = vpop.f32.mrb[0].mxu0
        %v1000 = vadd.f32 %v788, %v999
        %v1001 = vpop.f32.mrb[0].mxu0
        %v1002 = vadd.f32 %v792, %v1001
        %v1003 = vpop.f32.mrb[0].mxu0
        %v1004 = vpop.f32.mrb[0].mxu0
        %1005 = vdwg.mxu0
        %v1006 = vmax.f32 %v990, 0.0
        %v1007 = vmax.f32 %v992, 0.0
        %v1008 = vmax.f32 %v994, 0.0
        %v1009 = vmax.f32 %v996, 0.0
        %v1010 = vmax.f32 %v1000, 0.0
        %v1011 = vmax.f32 %v1002, 0.0
        %v1012 = vpack.c.bf16 %v1008, %v1006
        %v1013 = vpack.c.bf16 %v1009, %v1007
        %v1014 = vpack.c.bf16 %v1010, %v1010
        %v1015 = vpack.c.bf16 %v1011, %v1011
        %v1016 = vld [vmem:[#allocation7] sm:$0xf]
        %v1017 = vld [vmem:[#allocation7 + $0x4] sm:$0xf]
        %v1018 = vld [vmem:[#allocation7 + $0x8] sm:$0xf]
        %v1019 = vld [vmem:[#allocation7 + $0xc] sm:$0xf]
        %v1020 = vld [vmem:[#allocation7 + $0x10] sm:$0xf]
        %v1021 = vld [vmem:[#allocation7 + $0x14] sm:$0xf]
        %v1022 = vld [vmem:[#allocation7 + $0x18] sm:$0xf]
        %v1023 = vld [vmem:[#allocation7 + $0x1c] sm:$0xf]
        %v1024 = vld [vmem:[#allocation7 + $0x20] sm:$0xf]
        %v1025 = vld [vmem:[#allocation7 + $0x24] sm:$0xf]
        %v1026 = vld [vmem:[#allocation7 + $0x28] sm:$0xf]
        %v1027 = vld [vmem:[#allocation7 + $0x2c] sm:$0xf]
        %v1028 = vld [vmem:[#allocation7 + $0x30] sm:$0xf]
        %v1029 = vld [vmem:[#allocation7 + $0x34] sm:$0xf]
        %v1030 = vld [vmem:[#allocation7 + $0x38] sm:$0xf]
        %v1031 = vld [vmem:[#allocation7 + $0x3c] sm:$0xf]
        %v1032 = vld [vmem:[#allocation7 + $0x40] sm:$0xf]
        %v1033 = vld [vmem:[#allocation7 + $0x44] sm:$0xf]
        %v1034 = vld [vmem:[#allocation7 + $0x48] sm:$0xf]
        %v1035 = vld [vmem:[#allocation7 + $0x4c] sm:$0xf]
        %v1036 = vld [vmem:[#allocation7 + $0x50] sm:$0xf]
        %v1037 = vld [vmem:[#allocation7 + $0x54] sm:$0xf]
        %v1038 = vld [vmem:[#allocation7 + $0x58] sm:$0xf]
        %v1039 = vld [vmem:[#allocation7 + $0x5c] sm:$0xf]
        %v1040 = vld [vmem:[#allocation7 + $0x60] sm:$0xf]
        %v1041 = vld [vmem:[#allocation7 + $0x64] sm:$0xf]
        %v1042 = vld [vmem:[#allocation7 + $0x68] sm:$0xf]
        %v1043 = vld [vmem:[#allocation7 + $0x6c] sm:$0xf]
        %v1044 = vld [vmem:[#allocation7 + $0x70] sm:$0xf]
        %v1045 = vld [vmem:[#allocation7 + $0x74] sm:$0xf]
        %v1046 = vld [vmem:[#allocation7 + $0x78] sm:$0xf]
        %v1047 = vld [vmem:[#allocation7 + $0x7c] sm:$0xf]
        %v1048 = vld [vmem:[%s8] sm:$0x1]
        %v1050 = vlaneseq
        %v1051 = vshrl.u32 %v1050, 7
        %v1052 = vsub.s32 0, %v1051
        %v1053 = vrot.slane %v1048, %v1052
        %v1087 = vunpack.c.l.b16 %v1016
        %v1088 = vunpack.c.l.b16 %v1017
        %v1089 = vunpack.c.l.b16 %v1018
        %v1090 = vunpack.c.l.b16 %v1019
        %v1091 = vunpack.c.l.b16 %v1020
        %v1092 = vunpack.c.l.b16 %v1021
        %v1093 = vunpack.c.l.b16 %v1022
        %v1094 = vunpack.c.l.b16 %v1023
        %v1095 = vunpack.c.l.b16 %v1024
        %v1096 = vunpack.c.l.b16 %v1025
        %v1097 = vunpack.c.l.b16 %v1026
        %v1098 = vunpack.c.l.b16 %v1027
        %v1099 = vunpack.c.l.b16 %v1028
        %v1100 = vunpack.c.l.b16 %v1029
        %v1101 = vunpack.c.l.b16 %v1030
        %v1102 = vunpack.c.l.b16 %v1031
        %v1103 = vunpack.c.l.b16 %v1032
        %v1104 = vunpack.c.l.b16 %v1033
        %v1105 = vunpack.c.l.b16 %v1034
        %v1106 = vunpack.c.l.b16 %v1035
        %v1107 = vunpack.c.l.b16 %v1036
        %v1108 = vunpack.c.l.b16 %v1037
        %v1109 = vunpack.c.l.b16 %v1038
        %v1110 = vunpack.c.l.b16 %v1039
        %v1111 = vunpack.c.l.b16 %v1040
        %v1112 = vunpack.c.l.b16 %v1041
        %v1113 = vunpack.c.l.b16 %v1042
        %v1114 = vunpack.c.l.b16 %v1043
        %v1115 = vunpack.c.l.b16 %v1044
        %v1116 = vunpack.c.l.b16 %v1045
        %v1117 = vunpack.c.l.b16 %v1046
        %v1118 = vunpack.c.l.b16 %v1047
        %v1119 = vpack.c.b16 %v1088, %v1087
        %v1120 = vpack.c.b16 %v1090, %v1089
        %v1121 = vpack.c.b16 %v1092, %v1091
        %v1122 = vpack.c.b16 %v1094, %v1093
        %v1123 = vpack.c.b16 %v1096, %v1095
        %v1124 = vpack.c.b16 %v1098, %v1097
        %v1125 = vpack.c.b16 %v1100, %v1099
        %v1126 = vpack.c.b16 %v1102, %v1101
        %v1127 = vpack.c.b16 %v1104, %v1103
        %v1128 = vpack.c.b16 %v1106, %v1105
        %v1129 = vpack.c.b16 %v1108, %v1107
        %v1130 = vpack.c.b16 %v1110, %v1109
        %v1131 = vpack.c.b16 %v1112, %v1111
        %v1132 = vpack.c.b16 %v1114, %v1113
        %v1133 = vpack.c.b16 %v1116, %v1115
        %v1134 = vpack.c.b16 %v1118, %v1117
        %1151 = vmatprep.subr.bf16.mxu0 0
        %1152 = vmatpush1.bf16.msra.mxu0 %v1119
        %1153 = vmatprep.subr.bf16.mxu0 0
        %1154 = vmatpush1.bf16.msra.mxu0 %v1120
        %1155 = vmatprep.subr.bf16.mxu0 0
        %1156 = vmatpush1.bf16.msra.mxu0 %v1121
        %1157 = vmatprep.subr.bf16.mxu0 0
        %1158 = vmatpush1.bf16.msra.mxu0 %v1122
        %1159 = vmatprep.subr.bf16.mxu0 0
        %1160 = vmatpush1.bf16.msra.mxu0 %v1123
        %1161 = vmatprep.subr.bf16.mxu0 0
        %1162 = vmatpush1.bf16.msra.mxu0 %v1124
        %1163 = vmatprep.subr.bf16.mxu0 0
        %1164 = vmatpush1.bf16.msra.mxu0 %v1125
        %1165 = vmatprep.subr.bf16.mxu0 0
        %1166 = vmatpush1.bf16.msra.mxu0 %v1126
        %1167 = vmatprep.subr.bf16.mxu0 0
        %1168 = vmatpush1.bf16.msra.mxu0 %v1127
        %1169 = vmatprep.subr.bf16.mxu0 0
        %1170 = vmatpush1.bf16.msra.mxu0 %v1128
        %1171 = vmatprep.subr.bf16.mxu0 0
        %1172 = vmatpush1.bf16.msra.mxu0 %v1129
        %1173 = vmatprep.subr.bf16.mxu0 0
        %1174 = vmatpush1.bf16.msra.mxu0 %v1130
        %1175 = vmatprep.subr.bf16.mxu0 0
        %1176 = vmatpush1.bf16.msra.mxu0 %v1131
        %1177 = vmatprep.subr.bf16.mxu0 0
        %1178 = vmatpush1.bf16.msra.mxu0 %v1132
        %1179 = vmatprep.subr.bf16.mxu0 0
        %1180 = vmatpush1.bf16.msra.mxu0 %v1133
        %1181 = vmatprep.subr.bf16.mxu0 0
        %1182 = vmatpush1.bf16.msra.mxu0 %v1134
        %1183 = vmatprep.mubr.bf16.mxu0 %v1013
        %1184 = vmatmul.mubr.bf16.gmra.mrb[0].mxu0 %v1012
        %v1185 = vpop.f32.mrb[0].mxu0
        %v1186 = vadd.f32 %v1053, %v1185
        %v1187 = vpop.f32.mrb[0].mxu0
        %v1188 = vpop.f32.mrb[0].mxu0
        %v1189 = vadd.f32 %v1053, %v1188
        %v1190 = vpop.f32.mrb[0].mxu0
        %1191 = vmatprep.mubr.bf16.mxu0 %v1015
        %1192 = vmatmul.mubr.bf16.gmra.mrb[0].mxu0 %v1014
        %v1193 = vpop.f32.mrb[0].mxu0
        %v1194 = vadd.f32 %v1053, %v1193
        %v1195 = vpop.f32.mrb[0].mxu0
        %v1196 = vpop.f32.mrb[0].mxu0
        %v1197 = vpop.f32.mrb[0].mxu0
        %1198 = vdwg.mxu0
        %1199 = vst [vmem:[%s386] sm:$0xff] %v1186
        %1200 = vst [vmem:[%s386 + $0x8] sm:$0xff] %v1189
        %1201 = vst [vmem:[%s386 + $0x10] sm:$0xff] %v1194
        %s1202 = sand.u32 %s232, 1
        %s1203 = scalar_lea.sflag [#allocation4], %s1202
        %s1204 = sand.u32 %s232, 1
        %s1205 = smul.addr %s1204, 24
        %s1206 = scalar_lea.vmem [#allocation8], %s1205
        // Predicated region
        $region69: #{tpu_custom_call.1} parent=55 // pred_check
          %p1207 = pneg %p242
        $region70: #{tpu_custom_call.1} parent=55 // pred_check_branch
          %1209 = sbr.rel (%p1207) target = $region72
        $region71: #{tpu_custom_call.1} parent=55 // pred_region
          %s1210 = smul.u32 3, %s25
          %s1212 = ssub.s32 384, 384
          %1213 = vsyncadd %s1203, %s1212
          %s1214 = smul.addr %s1210, 128
          %s1215 = scalar_lea.hbm %s9, %s1214
          %s1216 = sshll.u32 %s1206, 4
          %s1217 = int_to_ptr.vmem [resolvable:$true] %s1216
          %1222 = dma.vmem_to_hbm [thread:$0]  %s1217, 384, %s1215, %s1203, 128, 128, 8
        $region72: #{tpu_custom_call.1} parent=55 // pred_fallthru
          _
      $region56: #{tpu_custom_call.1} parent=5 // pred_fallthru
        _
      %p1223 = scmp.le.s32.totalorder 2, %s20
      // Predicated region
      $region73: #{tpu_custom_call.1} parent=5 // pred_check
        %p1224 = pneg %p1223
      $region74: #{tpu_custom_call.1} parent=5 // pred_check_branch
        %1226 = sbr.rel (%p1224) target = $region76
      $region75: #{tpu_custom_call.1} parent=5 // pred_region
        %s1227 = ssub.s32 %s20, 2
        // Predicated region
        $region77: #{tpu_custom_call.1} parent=75 // pred_check
          %p1228 = pneg %p248
        $region78: #{tpu_custom_call.1} parent=75 // pred_check_branch
          %1230 = sbr.rel (%p1228) target = $region80
        $region79: #{tpu_custom_call.1} parent=75 // pred_region
          %s1231 = sand.u32 %s233, 1
          %s1232 = scalar_lea.sflag [#allocation4], %s1231
          %s1233 = sand.u32 %s233, 1
          %s1234 = smul.addr %s1233, 24
          %s1235 = scalar_lea.vmem [#allocation8], %s1234
          %1236 = dma.done %s1232, 384
        $region80: #{tpu_custom_call.1} parent=75 // pred_fallthru
          _
      $region76: #{tpu_custom_call.1} parent=5 // pred_fallthru
        _
    $region6: #{tpu_custom_call.1} parent=1 // loop_footer
      %s24 = sadd.s32 1, %s20
    $region7: #{tpu_custom_call.1} parent=1 // loop_footer_branch
      %19 = sbr.rel target = $region3
    $region8: #{tpu_custom_call.1} parent=1 // loop_exit
      _
    %1237 = vsyncpa [#allocation3], 1
    %s1238 = scalar_lea.sflag [#allocation3], 1
    %1239 = vsyncpa %s1238, 1
    %1240 = vsyncpa [#allocation6], 1
    %1241 = vsyncpa [#allocation4], 1
    %s1242 = scalar_lea.sflag [#allocation4], 1
    %1243 = vsyncpa %s1242, 1

// kernel: tpu_custom_call.1
$region0: #{tpu_custom_call.1}
  #allocation0 [shape = 'u32[]', space=smem, size = 0x4, offset = 0x4, fixed_abs, tag = 'smem constant byte address 0x4 - core index']
  #allocation1 [shape = 'u32[144,128]{1,0:T(1,128)}', space=vmem, size = 0x12000, scoped, tag = 'internal scratch']
  %s0 = inlined_call_operand.vmem [shape: f32[48,128], index: 0, kind: input, shape index: {}]
  %s1 = inlined_call_operand.vmem [shape: f32[48,4], index: 1, kind: input, shape index: {}]
  %s2 = inlined_call_operand.hbm [shape: bf16[128,256], index: 2, kind: input, shape index: {}]
  %s3 = inlined_call_operand.vmem [shape: f32[4,256], index: 3, kind: input, shape index: {}]
  %s4 = inlined_call_operand.vmem [shape: f32[1,256], index: 4, kind: input, shape index: {}]
  %s5 = inlined_call_operand.hbm [shape: bf16[256,256], index: 5, kind: input, shape index: {}]
  %s6 = inlined_call_operand.vmem [shape: f32[1,256], index: 6, kind: input, shape index: {}]
  %s7 = inlined_call_operand.hbm [shape: bf16[256,128], index: 7, kind: input, shape index: {}]
  %s8 = inlined_call_operand.vmem [shape: f32[1,128], index: 8, kind: input, shape index: {}]
  %s9 = inlined_call_operand.hbm [shape: f32[48,128], index: 9, kind: output, shape index: {}]
  %s10 = sld [smem:[#allocation0]]
  $region81: #{tpu_custom_call.1} parent=0
    _
  %s12 = ssub.s32 1, %s10
  %s13 = scalar_select 0, %s12, %s10
  $region1: #{tpu_custom_call.1} parent=0
    #allocation2 [shape = 'u8[65536]{0}', space=vmem, size = 0x10000, scoped, tag = 'input window, operand 2, single buffered']
    #allocation3 [shape = 's32[2]{0}', space=sflag, size = 0x8, scoped, tag = 'scoped memory for tpu_custom_call.1']
    #allocation4 [shape = 's32[2]{0}', space=sflag, size = 0x8, scoped, tag = 'scoped memory for tpu_custom_call.1']
    #allocation5 [shape = 'u8[131072]{0}', space=vmem, size = 0x20000, scoped, tag = 'input window, operand 5, single buffered']
    #allocation6 [shape = 's32[1]{0}', space=sflag, size = 0x4, scoped, tag = 'scoped memory for tpu_custom_call.1']
    #allocation7 [shape = 'u8[65536]{0}', space=vmem, size = 0x10000, scoped, tag = 'input window, operand 7, single buffered']
    #allocation8 [shape = 'u8[24576]{0}', space=vmem, size = 0x6000, scoped, tag = 'output window, operand 0']
    %14 = vsyncpa [#allocation3], 0
    %15 = vsyncpa [#allocation6], 0
    %16 = vsyncpa [#allocation4], 0
    %s17 = scalar_lea.sflag [#allocation4], 1
    %18 = vsyncpa %s17, 0
    loop: start=0, step=1, limit=4
    $region2: #{tpu_custom_call.1} parent=1 // loop_pre_header
      _
    $region3: #{tpu_custom_call.1} parent=1 // loop_header
      %s20 = sphi 0, %s24
      %p21 = scmp.ge.s32.totalorder %s20, 4
      %s30 = sphi 0, %s32
      %s33 = sphi 0, %s30
      %s34 = sphi 0, %s33
      %s50 = sphi 0, %s34
      %s56 = sphi 0, %s58
      %s59 = sphi 0, %s56
      %s60 = sphi 0, %s59
      %s76 = sphi 0, %s60
      %s80 = sphi 0, %s80
      %s82 = sphi 0, %s80
      %s83 = sphi 0, %s82
      %s97 = sphi 0, %s83
      %s101 = sphi 0, %s101
      %s103 = sphi 0, %s101
      %s104 = sphi 0, %s103
      %s118 = sphi 0, %s104
      %s122 = sphi 0, %s122
      %s124 = sphi 0, %s122
      %s125 = sphi 0, %s124
      %s139 = sphi 0, %s125
      %s143 = sphi 0, %s143
      %s145 = sphi 0, %s143
      %s146 = sphi 0, %s145
      %s160 = sphi 0, %s146
      %s164 = sphi 0, %s164
      %s166 = sphi 0, %s164
      %s167 = sphi 0, %s166
      %s181 = sphi 0, %s167
      %s185 = sphi 0, %s185
      %s187 = sphi 0, %s185
      %s188 = sphi 0, %s187
      %s202 = sphi 0, %s188
      %s206 = sphi 0, %s206
      %s208 = sphi 0, %s206
      %s209 = sphi 0, %s208
      %s223 = sphi 0, %s209
      %s229 = sphi 0, %s231
      %s232 = sphi 0, %s229
      %s233 = sphi 0, %s232
      %s249 = sphi 0, %s233
    $region4: #{tpu_custom_call.1} parent=1 // loop_header_branch
      %23 = sbr.rel (%p21) target = $region8
    $region5: #{tpu_custom_call.1} parent=1 // loop_body
      %s25 = ssub.s32 %s20, 1
      %s26 = ssub.s32 %s20, 2
      %s27 = sadd.s32 %s20, 1
      %s28 = ssub.s32 %s20, %s27
      %p29 = scmp.eq.s32.totalorder %s28, 0
      %s31 = sadd.s32 %s30, 1
      %s32 = scalar_select %p29, %s30, %s31
      %p35 = pneg %p29
      %p36 = scmp.eq.s32.totalorder %s20, 1
      %p37 = por %p35, %p36
      %p38 = scmp.ne.s32.totalorder %s30, %s33
      %p39 = scmp.eq.s32.totalorder %s20, 0
      %p40 = por %p38, %p39
      %p41 = scmp.ne.s32.totalorder %s30, %s33
      %p42 = scmp.eq.s32.totalorder %s25, 1
      %p43 = por %p41, %p42
      %p44 = scmp.ne.s32.totalorder %s33, %s34
      %p45 = scmp.eq.s32.totalorder %s25, 0
      %p46 = por %p44, %p45
      %p47 = scmp.ne.s32.totalorder %s33, %s34
      %p48 = scmp.eq.s32.totalorder %s26, 1
      %p49 = por %p47, %p48
      %p51 = scmp.ne.s32.totalorder %s34, %s50
      %p52 = scmp.eq.s32.totalorder %s26, 0
      %p53 = por %p51, %p52
      %s54 = ssub.s32 %s20, %s27
      %p55 = scmp.eq.s32.totalorder %s54, 0
      %s57 = sadd.s32 %s56, 1
      %s58 = scalar_select %p55, %s56, %s57
      %p61 = pneg %p55
      %p62 = scmp.eq.s32.totalorder %s20, 1
      %p63 = por %p61, %p62
      %p64 = scmp.ne.s32.totalorder %s56, %s59
      %p65 = scmp.eq.s32.totalorder %s20, 0
      %p66 = por %p64, %p65
      %p67 = scmp.ne.s32.totalorder %s56, %s59
      %p68 = scmp.eq.s32.totalorder %s25, 1
      %p69 = por %p67, %p68
      %p70 = scmp.ne.s32.totalorder %s59, %s60
      %p71 = scmp.eq.s32.totalorder %s25, 0
      %p72 = por %p70, %p71
      %p73 = scmp.ne.s32.totalorder %s59, %s60
      %p74 = scmp.eq.s32.totalorder %s26, 1
      %p75 = por %p73, %p74
      %p77 = scmp.ne.s32.totalorder %s60, %s76
      %p78 = scmp.eq.s32.totalorder %s26, 0
      %p79 = por %p77, %p78
      %s81 = sadd.s32 %s80, 1
      %p84 = scmp.eq.s32.totalorder %s20, 1
      %p85 = scmp.ne.s32.totalorder %s80, %s82
      %p86 = scmp.eq.s32.totalorder %s20, 0
      %p87 = por %p85, %p86
      %p88 = scmp.ne.s32.totalorder %s80, %s82
      %p89 = scmp.eq.s32.totalorder %s25, 1
      %p90 = por %p88, %p89
      %p91 = scmp.ne.s32.totalorder %s82, %s83
      %p92 = scmp.eq.s32.totalorder %s25, 0
      %p93 = por %p91, %p92
      %p94 = scmp.ne.s32.totalorder %s82, %s83
      %p95 = scmp.eq.s32.totalorder %s26, 1
      %p96 = por %p94, %p95
      %p98 = scmp.ne.s32.totalorder %s83, %s97
      %p99 = scmp.eq.s32.totalorder %s26, 0
      %p100 = por %p98, %p99
      %s102 = sadd.s32 %s101, 1
      %p105 = scmp.eq.s32.totalorder %s20, 1
      %p106 = scmp.ne.s32.totalorder %s101, %s103
      %p107 = scmp.eq.s32.totalorder %s20, 0
      %p108 = por %p106, %p107
      %p109 = scmp.ne.s32.totalorder %s101, %s103
      %p110 = scmp.eq.s32.totalorder %s25, 1
      %p111 = por %p109, %p110
      %p112 = scmp.ne.s32.totalorder %s103, %s104
      %p113 = scmp.eq.s32.totalorder %s25, 0
      %p114 = por %p112, %p113
      %p115 = scmp.ne.s32.totalorder %s103, %s104
      %p116 = scmp.eq.s32.totalorder %s26, 1
      %p117 = por %p115, %p116
      %p119 = scmp.ne.s32.totalorder %s104, %s118
      %p120 = scmp.eq.s32.totalorder %s26, 0
      %p121 = por %p119, %p120
      %s123 = sadd.s32 %s122, 1
      %p126 = scmp.eq.s32.totalorder %s20, 1
      %p127 = scmp.ne.s32.totalorder %s122, %s124
      %p128 = scmp.eq.s32.totalorder %s20, 0
      %p129 = por %p127, %p128
      %p130 = scmp.ne.s32.totalorder %s122, %s124
      %p131 = scmp.eq.s32.totalorder %s25, 1
      %p132 = por %p130, %p131
      %p133 = scmp.ne.s32.totalorder %s124, %s125
      %p134 = scmp.eq.s32.totalorder %s25, 0
      %p135 = por %p133, %p134
      %p136 = scmp.ne.s32.totalorder %s124, %s125
      %p137 = scmp.eq.s32.totalorder %s26, 1
      %p138 = por %p136, %p137
      %p140 = scmp.ne.s32.totalorder %s125, %s139
      %p141 = scmp.eq.s32.totalorder %s26, 0
      %p142 = por %p140, %p141
      %s144 = sadd.s32 %s143, 1
      %p147 = scmp.eq.s32.totalorder %s20, 1
      %p148 = scmp.ne.s32.totalorder %s143, %s145
      %p149 = scmp.eq.s32.totalorder %s20, 0
      %p150 = por %p148, %p149
      %p151 = scmp.ne.s32.totalorder %s143, %s145
      %p152 = scmp.eq.s32.totalorder %s25, 1
      %p153 = por %p151, %p152
      %p154 = scmp.ne.s32.totalorder %s145, %s146
      %p155 = scmp.eq.s32.totalorder %s25, 0
      %p156 = por %p154, %p155
      %p157 = scmp.ne.s32.totalorder %s145, %s146
      %p158 = scmp.eq.s32.totalorder %s26, 1
      %p159 = por %p157, %p158
      %p161 = scmp.ne.s32.totalorder %s146, %s160
      %p162 = scmp.eq.s32.totalorder %s26, 0
      %p163 = por %p161, %p162
      %s165 = sadd.s32 %s164, 1
      %p168 = scmp.eq.s32.totalorder %s20, 1
      %p169 = scmp.ne.s32.totalorder %s164, %s166
      %p170 = scmp.eq.s32.totalorder %s20, 0
      %p171 = por %p169, %p170
      %p172 = scmp.ne.s32.totalorder %s164, %s166
      %p173 = scmp.eq.s32.totalorder %s25, 1
      %p174 = por %p172, %p173
      %p175 = scmp.ne.s32.totalorder %s166, %s167
      %p176 = scmp.eq.s32.totalorder %s25, 0
      %p177 = por %p175, %p176
      %p178 = scmp.ne.s32.totalorder %s166, %s167
      %p179 = scmp.eq.s32.totalorder %s26, 1
      %p180 = por %p178, %p179
      %p182 = scmp.ne.s32.totalorder %s167, %s181
      %p183 = scmp.eq.s32.totalorder %s26, 0
      %p184 = por %p182, %p183
      %s186 = sadd.s32 %s185, 1
      %p189 = scmp.eq.s32.totalorder %s20, 1
      %p190 = scmp.ne.s32.totalorder %s185, %s187
      %p191 = scmp.eq.s32.totalorder %s20, 0
      %p192 = por %p190, %p191
      %p193 = scmp.ne.s32.totalorder %s185, %s187
      %p194 = scmp.eq.s32.totalorder %s25, 1
      %p195 = por %p193, %p194
      %p196 = scmp.ne.s32.totalorder %s187, %s188
      %p197 = scmp.eq.s32.totalorder %s25, 0
      %p198 = por %p196, %p197
      %p199 = scmp.ne.s32.totalorder %s187, %s188
      %p200 = scmp.eq.s32.totalorder %s26, 1
      %p201 = por %p199, %p200
      %p203 = scmp.ne.s32.totalorder %s188, %s202
      %p204 = scmp.eq.s32.totalorder %s26, 0
      %p205 = por %p203, %p204
      %s207 = sadd.s32 %s206, 1
      %p210 = scmp.eq.s32.totalorder %s20, 1
      %p211 = scmp.ne.s32.totalorder %s206, %s208
      %p212 = scmp.eq.s32.totalorder %s20, 0
      %p213 = por %p211, %p212
      %p214 = scmp.ne.s32.totalorder %s206, %s208
      %p215 = scmp.eq.s32.totalorder %s25, 1
      %p216 = por %p214, %p215
      %p217 = scmp.ne.s32.totalorder %s208, %s209
      %p218 = scmp.eq.s32.totalorder %s25, 0
      %p219 = por %p217, %p218
      %p220 = scmp.ne.s32.totalorder %s208, %s209
      %p221 = scmp.eq.s32.totalorder %s26, 1
      %p222 = por %p220, %p221
      %p224 = scmp.ne.s32.totalorder %s209, %s223
      %p225 = scmp.eq.s32.totalorder %s26, 0
      %p226 = por %p224, %p225
      %s227 = ssub.s32 %s20, %s27
      %p228 = scmp.eq.s32.totalorder %s227, 0
      %s230 = sadd.s32 %s229, 1
      %s231 = scalar_select %p228, %s229, %s230
      %p234 = pneg %p228
      %p235 = scmp.eq.s32.totalorder %s20, 1
      %p236 = por %p234, %p235
      %p237 = scmp.ne.s32.totalorder %s229, %s232
      %p238 = scmp.eq.s32.totalorder %s20, 0
      %p239 = por %p237, %p238
      %p240 = scmp.ne.s32.totalorder %s229, %s232
      %p241 = scmp.eq.s32.totalorder %s25, 1
      %p242 = por %p240, %p241
      %p243 = scmp.ne.s32.totalorder %s232, %s233
      %p244 = scmp.eq.s32.totalorder %s25, 0
      %p245 = por %p243, %p244
      %p246 = scmp.ne.s32.totalorder %s232, %s233
      %p247 = scmp.eq.s32.totalorder %s26, 1
      %p248 = por %p246, %p247
      %p250 = scmp.ne.s32.totalorder %s233, %s249
      %p251 = scmp.eq.s32.totalorder %s26, 0
      %p252 = por %p250, %p251
      %p253 = scmp.le.s32.totalorder 1, %s20
      %p254 = scmp.lt.s32.totalorder %s20, 3
      %p255 = pnand %p253, %p254
      %p256 = pneg %p255
      // Predicated region
      $region9: #{tpu_custom_call.1} parent=5 // pred_check
        _
      $region10: #{tpu_custom_call.1} parent=5 // pred_check_branch
        %258 = sbr.rel (%p255) target = $region12
      $region11: #{tpu_custom_call.1} parent=5 // pred_region
        %s259 = ssub.s32 %s20, 1
        // Predicated region
        $region13: #{tpu_custom_call.1} parent=11 // pred_check
          %p260 = pneg %p93
        $region14: #{tpu_custom_call.1} parent=11 // pred_check_branch
          %262 = sbr.rel (%p260) target = $region16
        $region15: #{tpu_custom_call.1} parent=11 // pred_region
          %s264 = ssub.s32 2048, 2048
          %265 = vsyncadd [#allocation3], %s264
          %s266 = sshll.u32 [#allocation2], 4
          %s267 = int_to_ptr.vmem [resolvable:$true] %s266
          %272 = dma.hbm_to_vmem [thread:$0]  %s2, 2048, %s267, [#allocation3], 128, 128, 8
        $region16: #{tpu_custom_call.1} parent=11 // pred_fallthru
          _
        // Predicated region
        $region17: #{tpu_custom_call.1} parent=11 // pred_check
          %p273 = pneg %p114
        $region18: #{tpu_custom_call.1} parent=11 // pred_check_branch
          %275 = sbr.rel (%p273) target = $region20
        $region19: #{tpu_custom_call.1} parent=11 // pred_region
          _
        $region20: #{tpu_custom_call.1} parent=11 // pred_fallthru
          _
        // Predicated region
        $region21: #{tpu_custom_call.1} parent=11 // pred_check
          %p276 = pneg %p135
        $region22: #{tpu_custom_call.1} parent=11 // pred_check_branch
          %278 = sbr.rel (%p276) target = $region24
        $region23: #{tpu_custom_call.1} parent=11 // pred_region
          _
        $region24: #{tpu_custom_call.1} parent=11 // pred_fallthru
          _
        // Predicated region
        $region25: #{tpu_custom_call.1} parent=11 // pred_check
          %p279 = pneg %p156
        $region26: #{tpu_custom_call.1} parent=11 // pred_check_branch
          %281 = sbr.rel (%p279) target = $region28
        $region27: #{tpu_custom_call.1} parent=11 // pred_region
          %s283 = ssub.s32 4096, 4096
          %284 = vsyncadd [#allocation6], %s283
          %s285 = sshll.u32 [#allocation5], 4
          %s286 = int_to_ptr.vmem [resolvable:$true] %s285
          %291 = dma.hbm_to_vmem [thread:$0]  %s5, 4096, %s286, [#allocation6], 128, 128, 8
        $region28: #{tpu_custom_call.1} parent=11 // pred_fallthru
          _
        // Predicated region
        $region29: #{tpu_custom_call.1} parent=11 // pred_check
          %p292 = pneg %p177
        $region30: #{tpu_custom_call.1} parent=11 // pred_check_branch
          %294 = sbr.rel (%p292) target = $region32
        $region31: #{tpu_custom_call.1} parent=11 // pred_region
          _
        $region32: #{tpu_custom_call.1} parent=11 // pred_fallthru
          _
        // Predicated region
        $region33: #{tpu_custom_call.1} parent=11 // pred_check
          %p295 = pneg %p198
        $region34: #{tpu_custom_call.1} parent=11 // pred_check_branch
          %297 = sbr.rel (%p295) target = $region36
        $region35: #{tpu_custom_call.1} parent=11 // pred_region
          %s299 = ssub.s32 2048, 2048
          %300 = vsyncadd [#allocation6], %s299
          %s301 = sshll.u32 [#allocation7], 4
          %s302 = int_to_ptr.vmem [resolvable:$true] %s301
          %307 = dma.hbm_to_vmem [thread:$0]  %s7, 2048, %s302, [#allocation6], 64, 64, 4
        $region36: #{tpu_custom_call.1} parent=11 // pred_fallthru
          _
        // Predicated region
        $region37: #{tpu_custom_call.1} parent=11 // pred_check
          %p308 = pneg %p219
        $region38: #{tpu_custom_call.1} parent=11 // pred_check_branch
          %310 = sbr.rel (%p308) target = $region40
        $region39: #{tpu_custom_call.1} parent=11 // pred_region
          _
        $region40: #{tpu_custom_call.1} parent=11 // pred_fallthru
          _
      $region12: #{tpu_custom_call.1} parent=5 // pred_fallthru
        _
      %p311 = scmp.lt.s32.totalorder %s20, 2
      // Predicated region
      $region41: #{tpu_custom_call.1} parent=5 // pred_check
        %p312 = pneg %p311
      $region42: #{tpu_custom_call.1} parent=5 // pred_check_branch
        %314 = sbr.rel (%p312) target = $region44
      $region43: #{tpu_custom_call.1} parent=5 // pred_region
        // Predicated region
        $region45: #{tpu_custom_call.1} parent=43 // pred_check
          %p315 = pneg %p40
        $region46: #{tpu_custom_call.1} parent=43 // pred_check_branch
          %317 = sbr.rel (%p315) target = $region48
        $region47: #{tpu_custom_call.1} parent=43 // pred_region
          %s318 = smul.u32 3, %s20
          %p319 = scmp.lt.s32.totalorder %s318, 5
          %s320 = scalar_select %p319, %s318, 5
          %s321 = smul.addr %s320, 8
          %s322 = scalar_lea.vmem %s0, %s321
          %s323 = smul.u32 3, %s20
        $region48: #{tpu_custom_call.1} parent=43 // pred_fallthru
          _
        // Predicated region
        $region49: #{tpu_custom_call.1} parent=43 // pred_check
          %p324 = pneg %p66
        $region50: #{tpu_custom_call.1} parent=43 // pred_check_branch
          %326 = sbr.rel (%p324) target = $region52
        $region51: #{tpu_custom_call.1} parent=43 // pred_region
          %s327 = smul.u32 3, %s20
          %p328 = scmp.lt.s32.totalorder %s327, 5
          %s329 = scalar_select %p328, %s327, 5
          %s330 = smul.addr %s329, 8
          %s331 = scalar_lea.vmem %s1, %s330
          %s332 = smul.u32 3, %s20
        $region52: #{tpu_custom_call.1} parent=43 // pred_fallthru
          _
      $region44: #{tpu_custom_call.1} parent=5 // pred_fallthru
        _
      %p333 = scmp.le.s32.totalorder 1, %s20
      %p334 = scmp.lt.s32.totalorder %s20, 3
      %p335 = pnand %p333, %p334
      %p336 = pneg %p335
      // Predicated region
      $region53: #{tpu_custom_call.1} parent=5 // pred_check
        _
      $region54: #{tpu_custom_call.1} parent=5 // pred_check_branch
        %338 = sbr.rel (%p335) target = $region56
      $region55: #{tpu_custom_call.1} parent=5 // pred_region
        %s339 = ssub.s32 %s20, 1
        // Predicated region
        $region57: #{tpu_custom_call.1} parent=55 // pred_check
          %p340 = pneg %p93
        $region58: #{tpu_custom_call.1} parent=55 // pred_check_branch
          %342 = sbr.rel (%p340) target = $region60
        $region59: #{tpu_custom_call.1} parent=55 // pred_region
          %343 = dma.done [#allocation3], 2048
        $region60: #{tpu_custom_call.1} parent=55 // pred_fallthru
          _
        // Predicated region
        $region61: #{tpu_custom_call.1} parent=55 // pred_check
          %p344 = pneg %p156
        $region62: #{tpu_custom_call.1} parent=55 // pred_check_branch
          %346 = sbr.rel (%p344) target = $region64
        $region63: #{tpu_custom_call.1} parent=55 // pred_region
          %347 = dma.done [#allocation6], 4096
        $region64: #{tpu_custom_call.1} parent=55 // pred_fallthru
          _
        // Predicated region
        $region65: #{tpu_custom_call.1} parent=55 // pred_check
          %p348 = pneg %p198
        $region66: #{tpu_custom_call.1} parent=55 // pred_check_branch
          %350 = sbr.rel (%p348) target = $region68
        $region67: #{tpu_custom_call.1} parent=55 // pred_region
          %351 = dma.done [#allocation6], 2048
        $region68: #{tpu_custom_call.1} parent=55 // pred_fallthru
          _
        %s352 = smul.u32 3, %s25
        %p353 = scmp.lt.s32.totalorder %s352, 5
        %s354 = scalar_select %p353, %s352, 5
        %s355 = smul.addr %s354, 8
        %s356 = scalar_lea.vmem %s0, %s355
        %p357 = pneg %p46
        %p358 = pneg %p43
        %s359 = smul.u32 3, %s25
        %p360 = scmp.lt.s32.totalorder %s359, 5
        %s361 = scalar_select %p360, %s359, 5
        %s362 = smul.addr %s361, 8
        %s363 = scalar_lea.vmem %s1, %s362
        %p364 = pneg %p72
        %p365 = pneg %p69
        %p366 = pneg %p93
        %p367 = pneg %p90
        %p368 = pneg %p114
        %p369 = pneg %p111
        %p370 = pneg %p135
        %p371 = pneg %p132
        %p372 = pneg %p156
        %p373 = pneg %p153
        %p374 = pneg %p177
        %p375 = pneg %p174
        %p376 = pneg %p198
        %p377 = pneg %p195
        %p378 = pneg %p219
        %p379 = pneg %p216
        %p380 = pneg %p245
        %p381 = pneg %p242
        %s382 = sand.u32 %s232, 1
        %s383 = scalar_lea.sflag [#allocation4], %s382
        %s384 = sand.u32 %s232, 1
        %s385 = smul.addr %s384, 24
        %s386 = scalar_lea.vmem [#allocation8], %s385
        %s387 = smul.u32 3, %s25
        %p388 = scmp.lt.s32.totalorder %s387, 5
        %s389 = scalar_select %p388, %s387, 5
        %s390 = smul.addr %s389, 8
        %s391 = scalar_lea.vmem %s0, %s390
        %s392 = smul.u32 3, %s25
        %s393 = smul.u32 3, %s25
        %p394 = scmp.lt.s32.totalorder %s393, 5
        %s395 = scalar_select %p394, %s393, 5
        %s396 = smul.addr %s395, 8
        %s397 = scalar_lea.vmem %s1, %s396
        %s398 = smul.u32 3, %s25
        %s399 = smul.u32 3, %s25
        %v401 = vld [vmem:[%s391] sm:$0xff]
        %v402 = vld [vmem:[%s391 + $0x8] sm:$0xff]
        %v403 = vld [vmem:[%s391 + $0x10] sm:$0xff]
        %v404 = vpack.c.bf16 %v402, %v401
        %v405 = vpack.c.bf16 %v403, %v403
        %v406 = vld [vmem:[#allocation2] sm:$0xff]
        %v407 = vld [vmem:[#allocation2 + $0x8] sm:$0xff]
        %v408 = vld [vmem:[#allocation2 + $0x10] sm:$0xff]
        %v409 = vld [vmem:[#allocation2 + $0x18] sm:$0xff]
        %v410 = vld [vmem:[#allocation2 + $0x20] sm:$0xff]
        %v411 = vld [vmem:[#allocation2 + $0x28] sm:$0xff]
        %v412 = vld [vmem:[#allocation2 + $0x30] sm:$0xff]
        %v413 = vld [vmem:[#allocation2 + $0x38] sm:$0xff]
        %v414 = vld [vmem:[#allocation2 + $0x40] sm:$0xff]
        %v415 = vld [vmem:[#allocation2 + $0x48] sm:$0xff]
        %v416 = vld [vmem:[#allocation2 + $0x50] sm:$0xff]
        %v417 = vld [vmem:[#allocation2 + $0x58] sm:$0xff]
        %v418 = vld [vmem:[#allocation2 + $0x60] sm:$0xff]
        %v419 = vld [vmem:[#allocation2 + $0x68] sm:$0xff]
        %v420 = vld [vmem:[#allocation2 + $0x70] sm:$0xff]
        %v421 = vld [vmem:[#allocation2 + $0x78] sm:$0xff]
        %v422 = vld [vmem:[%s397] sm:$0xff]
        %v423 = vld [vmem:[%s397 + $0x8] sm:$0xff]
        %v424 = vld [vmem:[%s397 + $0x10] sm:$0xff]
        %v425 = vld [vmem:[%s3] sm:$0xff]
        %427 = vset.pattern.permute.xlu0 0
        %428 = vperm.xlu0 %427, %v422
        %v429 = vpop.permute.xlu0 %428
        %432 = vset.pattern.permute.xlu0 0
        %433 = vperm.xlu0 %432, %v423
        %v434 = vpop.permute.xlu0 %433
        %437 = vset.pattern.permute.xlu0 0
        %438 = vperm.xlu0 %437, %v424
        %v439 = vpop.permute.xlu0 %438
        %v442 = vlaneseq
        %v443 = vshrl.u32 %v442, 7
        %v444 = vsub.s32 0, %v443
        %v445 = vrot.slane %v425, %v444
        %v446 = vlaneseq
        %v447 = vshrl.u32 %v446, 7
        %v448 = vsub.s32 4, %v447
        %v449 = vrot.slane %v425, %v448
        %v452 = vlaneseq
        %v453 = vshrl.u32 %v452, 7
        %v454 = vsub.s32 0, %v453
        %v455 = vrot.slane %v445, %v454
        %v456 = vlaneseq
        %v457 = vshrl.u32 %v456, 7
        %v458 = vsub.s32 0, %v457
        %v459 = vrot.slane %v449, %v458
        %v460 = vmul.f32 %v429, %v455
        %v461 = vmul.f32 %v429, %v459
        %v462 = vmul.f32 %v434, %v455
        %v463 = vmul.f32 %v434, %v459
        %v464 = vmul.f32 %v439, %v455
        %v465 = vmul.f32 %v439, %v459
        %v482 = vunpack.c.l.b16 %v406
        %v483 = vunpack.c.h.b16 %v406
        %v484 = vunpack.c.l.b16 %v407
        %v485 = vunpack.c.h.b16 %v407
        %v486 = vunpack.c.l.b16 %v408
        %v487 = vunpack.c.h.b16 %v408
        %v488 = vunpack.c.l.b16 %v409
        %v489 = vunpack.c.h.b16 %v409
        %v490 = vunpack.c.l.b16 %v410
        %v491 = vunpack.c.h.b16 %v410
        %v492 = vunpack.c.l.b16 %v411
        %v493 = vunpack.c.h.b16 %v411
        %v494 = vunpack.c.l.b16 %v412
        %v495 = vunpack.c.h.b16 %v412
        %v496 = vunpack.c.l.b16 %v413
        %v497 = vunpack.c.h.b16 %v413
        %v498 = vunpack.c.l.b16 %v414
        %v499 = vunpack.c.h.b16 %v414
        %v500 = vunpack.c.l.b16 %v415
        %v501 = vunpack.c.h.b16 %v415
        %v502 = vunpack.c.l.b16 %v416
        %v503 = vunpack.c.h.b16 %v416
        %v504 = vunpack.c.l.b16 %v417
        %v505 = vunpack.c.h.b16 %v417
        %v506 = vunpack.c.l.b16 %v418
        %v507 = vunpack.c.h.b16 %v418
        %v508 = vunpack.c.l.b16 %v419
        %v509 = vunpack.c.h.b16 %v419
        %v510 = vunpack.c.l.b16 %v420
        %v511 = vunpack.c.h.b16 %v420
        %v512 = vunpack.c.l.b16 %v421
        %v513 = vunpack.c.h.b16 %v421
        %v514 = vpack.c.b16 %v484, %v482
        %v515 = vpack.c.b16 %v485, %v483
        %v516 = vpack.c.b16 %v488, %v486
        %v517 = vpack.c.b16 %v489, %v487
        %v518 = vpack.c.b16 %v492, %v490
        %v519 = vpack.c.b16 %v493, %v491
        %v520 = vpack.c.b16 %v496, %v494
        %v521 = vpack.c.b16 %v497, %v495
        %v522 = vpack.c.b16 %v500, %v498
        %v523 = vpack.c.b16 %v501, %v499
        %v524 = vpack.c.b16 %v504, %v502
        %v525 = vpack.c.b16 %v505, %v503
        %v526 = vpack.c.b16 %v508, %v506
        %v527 = vpack.c.b16 %v509, %v507
        %v528 = vpack.c.b16 %v512, %v510
        %v529 = vpack.c.b16 %v513, %v511
        %546 = vmatprep.subr.bf16.mxu0 %v515
        %547 = vmatpush1.bf16.msra.mxu0 %v514
        %548 = vmatprep.subr.bf16.mxu0 %v517
        %549 = vmatpush1.bf16.msra.mxu0 %v516
        %550 = vmatprep.subr.bf16.mxu0 %v519
        %551 = vmatpush1.bf16.msra.mxu0 %v518
        %552 = vmatprep.subr.bf16.mxu0 %v521
        %553 = vmatpush1.bf16.msra.mxu0 %v520
        %554 = vmatprep.subr.bf16.mxu0 %v523
        %555 = vmatpush1.bf16.msra.mxu0 %v522
        %556 = vmatprep.subr.bf16.mxu0 %v525
        %557 = vmatpush1.bf16.msra.mxu0 %v524
        %558 = vmatprep.subr.bf16.mxu0 %v527
        %559 = vmatpush1.bf16.msra.mxu0 %v526
        %560 = vmatprep.subr.bf16.mxu0 %v529
        %561 = vmatpush1.bf16.msra.mxu0 %v528
        %562 = vmatprep.subr.bf16.mxu0 0
        %563 = vmatpush1.bf16.msra.mxu0 0
        %564 = vmatprep.subr.bf16.mxu0 0
        %565 = vmatpush1.bf16.msra.mxu0 0
        %566 = vmatprep.subr.bf16.mxu0 0
        %567 = vmatpush1.bf16.msra.mxu0 0
        %568 = vmatprep.subr.bf16.mxu0 0
        %569 = vmatpush1.bf16.msra.mxu0 0
        %570 = vmatprep.subr.bf16.mxu0 0
        %571 = vmatpush1.bf16.msra.mxu0 0
        %572 = vmatprep.subr.bf16.mxu0 0
        %573 = vmatpush1.bf16.msra.mxu0 0
        %574 = vmatprep.subr.bf16.mxu0 0
        %575 = vmatpush1.bf16.msra.mxu0 0
        %576 = vmatprep.subr.bf16.mxu0 0
        %577 = vmatpush1.bf16.msra.mxu0 0
        %578 = vmatprep.mubr.bf16.mxu0 0
        %579 = vmatmul.mubr.bf16.gmra.mrb[0].mxu0 %v404
        %v580 = vpop.f32.mrb[0].mxu0
        %v581 = vadd.f32 %v460, %v580
        %v582 = vpop.f32.mrb[0].mxu0
        %v583 = vadd.f32 %v461, %v582
        %v584 = vpop.f32.mrb[0].mxu0
        %v585 = vadd.f32 %v462, %v584
        %v586 = vpop.f32.mrb[0].mxu0
        %v587 = vadd.f32 %v463, %v586
        %588 = vmatprep.mubr.bf16.mxu0 0
        %589 = vmatmul.mubr.bf16.gmra.mrb[0].mxu0 %v405
        %v590 = vpop.f32.mrb[0].mxu0
        %v591 = vadd.f32 %v464, %v590
        %v592 = vpop.f32.mrb[0].mxu0
        %v593 = vadd.f32 %v465, %v592
        %v594 = vpop.f32.mrb[0].mxu0
        %v595 = vpop.f32.mrb[0].mxu0
        %596 = vdwg.mxu0
        %597 = vset.pattern.permute.xlu0 1
        %598 = vperm.xlu0 %597, %v422
        %v599 = vpop.permute.xlu0 %598
        %601 = vset.pattern.permute.xlu0 1
        %602 = vperm.xlu0 %601, %v423
        %v603 = vpop.permute.xlu0 %602
        %605 = vset.pattern.permute.xlu0 1
        %606 = vperm.xlu0 %605, %v424
        %v607 = vpop.permute.xlu0 %606
        %v609 = vlaneseq
        %v610 = vshrl.u32 %v609, 7
        %v611 = vsub.s32 1, %v610
        %v612 = vrot.slane %v425, %v611
        %v613 = vlaneseq
        %v614 = vshrl.u32 %v613, 7
        %v615 = vsub.s32 5, %v614
        %v616 = vrot.slane %v425, %v615
        %v619 = vlaneseq
        %v620 = vshrl.u32 %v619, 7
        %v621 = vsub.s32 1, %v620
        %v622 = vrot.slane %v612, %v621
        %v623 = vlaneseq
        %v624 = vshrl.u32 %v623, 7
        %v625 = vsub.s32 1, %v624
        %v626 = vrot.slane %v616, %v625
        %v627 = vmul.f32 %v599, %v622
        %v628 = vmul.f32 %v599, %v626
        %v629 = vmul.f32 %v603, %v622
        %v630 = vmul.f32 %v603, %v626
        %v631 = vmul.f32 %v607, %v622
        %v632 = vmul.f32 %v607, %v626
        %v633 = vadd.f32 %v581, %v627
        %v634 = vadd.f32 %v583, %v628
        %v635 = vadd.f32 %v585, %v629
        %v636 = vadd.f32 %v587, %v630
        %v637 = vadd.f32 %v591, %v631
        %v638 = vadd.f32 %v593, %v632
        %639 = vset.pattern.permute.xlu0 2
        %640 = vperm.xlu0 %639, %v422
        %v641 = vpop.permute.xlu0 %640
        %643 = vset.pattern.permute.xlu0 2
        %644 = vperm.xlu0 %643, %v423
        %v645 = vpop.permute.xlu0 %644
        %647 = vset.pattern.permute.xlu0 2
        %648 = vperm.xlu0 %647, %v424
        %v649 = vpop.permute.xlu0 %648
        %v651 = vlaneseq
        %v652 = vshrl.u32 %v651, 7
        %v653 = vsub.s32 2, %v652
        %v654 = vrot.slane %v425, %v653
        %v655 = vlaneseq
        %v656 = vshrl.u32 %v655, 7
        %v657 = vsub.s32 6, %v656
        %v658 = vrot.slane %v425, %v657
        %v661 = vlaneseq
        %v662 = vshrl.u32 %v661, 7
        %v663 = vsub.s32 2, %v662
        %v664 = vrot.slane %v654, %v663
        %v665 = vlaneseq
        %v666 = vshrl.u32 %v665, 7
        %v667 = vsub.s32 2, %v666
        %v668 = vrot.slane %v658, %v667
        %v669 = vmul.f32 %v641, %v664
        %v670 = vmul.f32 %v641, %v668
        %v671 = vmul.f32 %v645, %v664
        %v672 = vmul.f32 %v645, %v668
        %v673 = vmul.f32 %v649, %v664
        %v674 = vmul.f32 %v649, %v668
        %v675 = vadd.f32 %v633, %v669
        %v676 = vadd.f32 %v634, %v670
        %v677 = vadd.f32 %v635, %v671
        %v678 = vadd.f32 %v636, %v672
        %v679 = vadd.f32 %v637, %v673
        %v680 = vadd.f32 %v638, %v674
        %681 = vset.pattern.permute.xlu0 3
        %682 = vperm.xlu0 %681, %v422
        %v683 = vpop.permute.xlu0 %682
        %685 = vset.pattern.permute.xlu0 3
        %686 = vperm.xlu0 %685, %v423
        %v687 = vpop.permute.xlu0 %686
        %689 = vset.pattern.permute.xlu0 3
        %690 = vperm.xlu0 %689, %v424
        %v691 = vpop.permute.xlu0 %690
        %v693 = vlaneseq
        %v694 = vshrl.u32 %v693, 7
        %v695 = vsub.s32 3, %v694
        %v696 = vrot.slane %v425, %v695
        %v697 = vlaneseq
        %v698 = vshrl.u32 %v697, 7
        %v699 = vsub.s32 7, %v698
        %v700 = vrot.slane %v425, %v699
        %v703 = vlaneseq
        %v704 = vshrl.u32 %v703, 7
        %v705 = vsub.s32 3, %v704
        %v706 = vrot.slane %v696, %v705
        %v707 = vlaneseq
        %v708 = vshrl.u32 %v707, 7
        %v709 = vsub.s32 3, %v708
        %v710 = vrot.slane %v700, %v709
        %v711 = vmul.f32 %v683, %v706
        %v712 = vmul.f32 %v683, %v710
        %v713 = vmul.f32 %v687, %v706
        %v714 = vmul.f32 %v687, %v710
        %v715 = vmul.f32 %v691, %v706
        %v716 = vmul.f32 %v691, %v710
        %v717 = vadd.f32 %v675, %v711
        %v718 = vadd.f32 %v676, %v712
        %v719 = vadd.f32 %v677, %v713
        %v720 = vadd.f32 %v678, %v714
        %v721 = vadd.f32 %v679, %v715
        %v722 = vadd.f32 %v680, %v716
        %v723 = vld [vmem:[%s4] sm:$0x3]
        %v725 = vlaneseq
        %v726 = vshrl.u32 %v725, 7
        %v727 = vsub.s32 0, %v726
        %v728 = vrot.slane %v723, %v727
        %v729 = vlaneseq
        %v730 = vshrl.u32 %v729, 7
        %v731 = vsub.s32 1, %v730
        %v732 = vrot.slane %v723, %v731
        %v735 = vadd.f32 %v717, %v728
        %v736 = vadd.f32 %v718, %v732
        %v737 = vadd.f32 %v719, %v728
        %v738 = vadd.f32 %v720, %v732
        %v739 = vadd.f32 %v721, %v728
        %v740 = vadd.f32 %v722, %v732
        %v741 = vmax.f32 %v735, 0.0
        %v742 = vmax.f32 %v736, 0.0
        %v743 = vmax.f32 %v737, 0.0
        %v744 = vmax.f32 %v738, 0.0
        %v745 = vmax.f32 %v739, 0.0
        %v746 = vmax.f32 %v740, 0.0
        %v747 = vpack.c.bf16 %v743, %v741
        %v748 = vpack.c.bf16 %v744, %v742
        %v749 = vpack.c.bf16 %v745, %v745
        %v750 = vpack.c.bf16 %v746, %v746
        %v751 = vld [vmem:[#allocation5] sm:$0xff]
        %v752 = vld [vmem:[#allocation5 + $0x8] sm:$0xff]
        %v753 = vld [vmem:[#allocation5 + $0x10] sm:$0xff]
        %v754 = vld [vmem:[#allocation5 + $0x18] sm:$0xff]
        %v755 = vld [vmem:[#allocation5 + $0x20] sm:$0xff]
        %v756 = vld [vmem:[#allocation5 + $0x28] sm:$0xff]
        %v757 = vld [vmem:[#allocation5 + $0x30] sm:$0xff]
        %v758 = vld [vmem:[#allocation5 + $0x38] sm:$0xff]
        %v759 = vld [vmem:[#allocation5 + $0x40] sm:$0xff]
        %v760 = vld [vmem:[#allocation5 + $0x48] sm:$0xff]
        %v761 = vld [vmem:[#allocation5 + $0x50] sm:$0xff]
        %v762 = vld [vmem:[#allocation5 + $0x58] sm:$0xff]
        %v763 = vld [vmem:[#allocation5 + $0x60] sm:$0xff]
        %v764 = vld [vmem:[#allocation5 + $0x68] sm:$0xff]
        %v765 = vld [vmem:[#allocation5 + $0x70] sm:$0xff]
        %v766 = vld [vmem:[#allocation5 + $0x78] sm:$0xff]
        %v767 = vld [vmem:[#allocation5 + $0x80] sm:$0xff]
        %v768 = vld [vmem:[#allocation5 + $0x88] sm:$0xff]
        %v769 = vld [vmem:[#allocation5 + $0x90] sm:$0xff]
        %v770 = vld [vmem:[#allocation5 + $0x98] sm:$0xff]
        %v771 = vld [vmem:[#allocation5 + $0xa0] sm:$0xff]
        %v772 = vld [vmem:[#allocation5 + $0xa8] sm:$0xff]
        %v773 = vld [vmem:[#allocation5 + $0xb0] sm:$0xff]
        %v774 = vld [vmem:[#allocation5 + $0xb8] sm:$0xff]
        %v775 = vld [vmem:[#allocation5 + $0xc0] sm:$0xff]
        %v776 = vld [vmem:[#allocation5 + $0xc8] sm:$0xff]
        %v777 = vld [vmem:[#allocation5 + $0xd0] sm:$0xff]
        %v778 = vld [vmem:[#allocation5 + $0xd8] sm:$0xff]
        %v779 = vld [vmem:[#allocation5 + $0xe0] sm:$0xff]
        %v780 = vld [vmem:[#allocation5 + $0xe8] sm:$0xff]
        %v781 = vld [vmem:[#allocation5 + $0xf0] sm:$0xff]
        %v782 = vld [vmem:[#allocation5 + $0xf8] sm:$0xff]
        %v783 = vld [vmem:[%s6] sm:$0x3]
        %v785 = vlaneseq
        %v786 = vshrl.u32 %v785, 7
        %v787 = vsub.s32 0, %v786
        %v788 = vrot.slane %v783, %v787
        %v789 = vlaneseq
        %v790 = vshrl.u32 %v789, 7
        %v791 = vsub.s32 1, %v790
        %v792 = vrot.slane %v783, %v791
        %v827 = vunpack.c.l.b16 %v751
        %v828 = vunpack.c.h.b16 %v751
        %v829 = vunpack.c.l.b16 %v752
        %v830 = vunpack.c.h.b16 %v752
        %v831 = vunpack.c.l.b16 %v753
        %v832 = vunpack.c.h.b16 %v753
        %v833 = vunpack.c.l.b16 %v754
        %v834 = vunpack.c.h.b16 %v754
        %v835 = vunpack.c.l.b16 %v755
        %v836 = vunpack.c.h.b16 %v755
        %v837 = vunpack.c.l.b16 %v756
        %v838 = vunpack.c.h.b16 %v756
        %v839 = vunpack.c.l.b16 %v757
        %v840 = vunpack.c.h.b16 %v757
        %v841 = vunpack.c.l.b16 %v758
        %v842 = vunpack.c.h.b16 %v758
        %v843 = vunpack.c.l.b16 %v759
        %v844 = vunpack.c.h.b16 %v759
        %v845 = vunpack.c.l.b16 %v760
        %v846 = vunpack.c.h.b16 %v760
        %v847 = vunpack.c.l.b16 %v761
        %v848 = vunpack.c.h.b16 %v761
        %v849 = vunpack.c.l.b16 %v762
        %v850 = vunpack.c.h.b16 %v762
        %v851 = vunpack.c.l.b16 %v763
        %v852 = vunpack.c.h.b16 %v763
        %v853 = vunpack.c.l.b16 %v764
        %v854 = vunpack.c.h.b16 %v764
        %v855 = vunpack.c.l.b16 %v765
        %v856 = vunpack.c.h.b16 %v765
        %v857 = vunpack.c.l.b16 %v766
        %v858 = vunpack.c.h.b16 %v766
        %v859 = vunpack.c.l.b16 %v767
        %v860 = vunpack.c.h.b16 %v767
        %v861 = vunpack.c.l.b16 %v768
        %v862 = vunpack.c.h.b16 %v768
        %v863 = vunpack.c.l.b16 %v769
        %v864 = vunpack.c.h.b16 %v769
        %v865 = vunpack.c.l.b16 %v770
        %v866 = vunpack.c.h.b16 %v770
        %v867 = vunpack.c.l.b16 %v771
        %v868 = vunpack.c.h.b16 %v771
        %v869 = vunpack.c.l.b16 %v772
        %v870 = vunpack.c.h.b16 %v772
        %v871 = vunpack.c.l.b16 %v773
        %v872 = vunpack.c.h.b16 %v773
        %v873 = vunpack.c.l.b16 %v774
        %v874 = vunpack.c.h.b16 %v774
        %v875 = vunpack.c.l.b16 %v775
        %v876 = vunpack.c.h.b16 %v775
        %v877 = vunpack.c.l.b16 %v776
        %v878 = vunpack.c.h.b16 %v776
        %v879 = vunpack.c.l.b16 %v777
        %v880 = vunpack.c.h.b16 %v777
        %v881 = vunpack.c.l.b16 %v778
        %v882 = vunpack.c.h.b16 %v778
        %v883 = vunpack.c.l.b16 %v779
        %v884 = vunpack.c.h.b16 %v779
        %v885 = vunpack.c.l.b16 %v780
        %v886 = vunpack.c.h.b16 %v780
        %v887 = vunpack.c.l.b16 %v781
        %v888 = vunpack.c.h.b16 %v781
        %v889 = vunpack.c.l.b16 %v782
        %v890 = vunpack.c.h.b16 %v782
        %v891 = vpack.c.b16 %v829, %v827
        %v892 = vpack.c.b16 %v830, %v828
        %v893 = vpack.c.b16 %v833, %v831
        %v894 = vpack.c.b16 %v834, %v832
        %v895 = vpack.c.b16 %v837, %v835
        %v896 = vpack.c.b16 %v838, %v836
        %v897 = vpack.c.b16 %v841, %v839
        %v898 = vpack.c.b16 %v842, %v840
        %v899 = vpack.c.b16 %v845, %v843
        %v900 = vpack.c.b16 %v846, %v844
        %v901 = vpack.c.b16 %v849, %v847
        %v902 = vpack.c.b16 %v850, %v848
        %v903 = vpack.c.b16 %v853, %v851
        %v904 = vpack.c.b16 %v854, %v852
        %v905 = vpack.c.b16 %v857, %v855
        %v906 = vpack.c.b16 %v858, %v856
        %v907 = vpack.c.b16 %v861, %v859
        %v908 = vpack.c.b16 %v862, %v860
        %v909 = vpack.c.b16 %v865, %v863
        %v910 = vpack.c.b16 %v866, %v864
        %v911 = vpack.c.b16 %v869, %v867
        %v912 = vpack.c.b16 %v870, %v868
        %v913 = vpack.c.b16 %v873, %v871
        %v914 = vpack.c.b16 %v874, %v872
        %v915 = vpack.c.b16 %v877, %v875
        %v916 = vpack.c.b16 %v878, %v876
        %v917 = vpack.c.b16 %v881, %v879
        %v918 = vpack.c.b16 %v882, %v880
        %v919 = vpack.c.b16 %v885, %v883
        %v920 = vpack.c.b16 %v886, %v884
        %v921 = vpack.c.b16 %v889, %v887
        %v922 = vpack.c.b16 %v890, %v888
        %955 = vmatprep.subr.bf16.mxu0 %v892
        %956 = vmatpush1.bf16.msra.mxu0 %v891
        %957 = vmatprep.subr.bf16.mxu0 %v894
        %958 = vmatpush1.bf16.msra.mxu0 %v893
        %959 = vmatprep.subr.bf16.mxu0 %v896
        %960 = vmatpush1.bf16.msra.mxu0 %v895
        %961 = vmatprep.subr.bf16.mxu0 %v898
        %962 = vmatpush1.bf16.msra.mxu0 %v897
        %963 = vmatprep.subr.bf16.mxu0 %v900
        %964 = vmatpush1.bf16.msra.mxu0 %v899
        %965 = vmatprep.subr.bf16.mxu0 %v902
        %966 = vmatpush1.bf16.msra.mxu0 %v901
        %967 = vmatprep.subr.bf16.mxu0 %v904
        %968 = vmatpush1.bf16.msra.mxu0 %v903
        %969 = vmatprep.subr.bf16.mxu0 %v906
        %970 = vmatpush1.bf16.msra.mxu0 %v905
        %971 = vmatprep.subr.bf16.mxu0 %v908
        %972 = vmatpush1.bf16.msra.mxu0 %v907
        %973 = vmatprep.subr.bf16.mxu0 %v910
        %974 = vmatpush1.bf16.msra.mxu0 %v909
        %975 = vmatprep.subr.bf16.mxu0 %v912
        %976 = vmatpush1.bf16.msra.mxu0 %v911
        %977 = vmatprep.subr.bf16.mxu0 %v914
        %978 = vmatpush1.bf16.msra.mxu0 %v913
        %979 = vmatprep.subr.bf16.mxu0 %v916
        %980 = vmatpush1.bf16.msra.mxu0 %v915
        %981 = vmatprep.subr.bf16.mxu0 %v918
        %982 = vmatpush1.bf16.msra.mxu0 %v917
        %983 = vmatprep.subr.bf16.mxu0 %v920
        %984 = vmatpush1.bf16.msra.mxu0 %v919
        %985 = vmatprep.subr.bf16.mxu0 %v922
        %986 = vmatpush1.bf16.msra.mxu0 %v921
        %987 = vmatprep.mubr.bf16.mxu0 %v748
        %988 = vmatmul.mubr.bf16.gmra.mrb[0].mxu0 %v747
        %v989 = vpop.f32.mrb[0].mxu0
        %v990 = vadd.f32 %v788, %v989
        %v991 = vpop.f32.mrb[0].mxu0
        %v992 = vadd.f32 %v792, %v991
        %v993 = vpop.f32.mrb[0].mxu0
        %v994 = vadd.f32 %v788, %v993
        %v995 = vpop.f32.mrb[0].mxu0
        %v996 = vadd.f32 %v792, %v995
        %997 = vmatprep.mubr.bf16.mxu0 %v750
        %998 = vmatmul.mubr.bf16.gmra.mrb[0].mxu0 %v749
        %v999 = vpop.f32.mrb[0].mxu0
        %v1000 = vadd.f32 %v788, %v999
        %v1001 = vpop.f32.mrb[0].mxu0
        %v1002 = vadd.f32 %v792, %v1001
        %v1003 = vpop.f32.mrb[0].mxu0
        %v1004 = vpop.f32.mrb[0].mxu0
        %1005 = vdwg.mxu0
        %v1006 = vmax.f32 %v990, 0.0
        %v1007 = vmax.f32 %v992, 0.0
        %v1008 = vmax.f32 %v994, 0.0
        %v1009 = vmax.f32 %v996, 0.0
        %v1010 = vmax.f32 %v1000, 0.0
        %v1011 = vmax.f32 %v1002, 0.0
        %v1012 = vpack.c.bf16 %v1008, %v1006
        %v1013 = vpack.c.bf16 %v1009, %v1007
        %v1014 = vpack.c.bf16 %v1010, %v1010
        %v1015 = vpack.c.bf16 %v1011, %v1011
        %v1016 = vld [vmem:[#allocation7] sm:$0xf]
        %v1017 = vld [vmem:[#allocation7 + $0x4] sm:$0xf]
        %v1018 = vld [vmem:[#allocation7 + $0x8] sm:$0xf]
        %v1019 = vld [vmem:[#allocation7 + $0xc] sm:$0xf]
        %v1020 = vld [vmem:[#allocation7 + $0x10] sm:$0xf]
        %v1021 = vld [vmem:[#allocation7 + $0x14] sm:$0xf]
        %v1022 = vld [vmem:[#allocation7 + $0x18] sm:$0xf]
        %v1023 = vld [vmem:[#allocation7 + $0x1c] sm:$0xf]
        %v1024 = vld [vmem:[#allocation7 + $0x20] sm:$0xf]
        %v1025 = vld [vmem:[#allocation7 + $0x24] sm:$0xf]
        %v1026 = vld [vmem:[#allocation7 + $0x28] sm:$0xf]
        %v1027 = vld [vmem:[#allocation7 + $0x2c] sm:$0xf]
        %v1028 = vld [vmem:[#allocation7 + $0x30] sm:$0xf]
        %v1029 = vld [vmem:[#allocation7 + $0x34] sm:$0xf]
        %v1030 = vld [vmem:[#allocation7 + $0x38] sm:$0xf]
        %v1031 = vld [vmem:[#allocation7 + $0x3c] sm:$0xf]
        %v1032 = vld [vmem:[#allocation7 + $0x40] sm:$0xf]
        %v1033 = vld [vmem:[#allocation7 + $0x44] sm:$0xf]
        %v1034 = vld [vmem:[#allocation7 + $0x48] sm:$0xf]
        %v1035 = vld [vmem:[#allocation7 + $0x4c] sm:$0xf]
        %v1036 = vld [vmem:[#allocation7 + $0x50] sm:$0xf]
        %v1037 = vld [vmem:[#allocation7 + $0x54] sm:$0xf]
        %v1038 = vld [vmem:[#allocation7 + $0x58] sm:$0xf]
        %v1039 = vld [vmem:[#allocation7 + $0x5c] sm:$0xf]
        %v1040 = vld [vmem:[#allocation7 + $0x60] sm:$0xf]
        %v1041 = vld [vmem:[#allocation7 + $0x64] sm:$0xf]
        %v1042 = vld [vmem:[#allocation7 + $0x68] sm:$0xf]
        %v1043 = vld [vmem:[#allocation7 + $0x6c] sm:$0xf]
        %v1044 = vld [vmem:[#allocation7 + $0x70] sm:$0xf]
        %v1045 = vld [vmem:[#allocation7 + $0x74] sm:$0xf]
        %v1046 = vld [vmem:[#allocation7 + $0x78] sm:$0xf]
        %v1047 = vld [vmem:[#allocation7 + $0x7c] sm:$0xf]
        %v1048 = vld [vmem:[%s8] sm:$0x1]
        %v1050 = vlaneseq
        %v1051 = vshrl.u32 %v1050, 7
        %v1052 = vsub.s32 0, %v1051
        %v1053 = vrot.slane %v1048, %v1052
        %v1087 = vunpack.c.l.b16 %v1016
        %v1088 = vunpack.c.l.b16 %v1017
        %v1089 = vunpack.c.l.b16 %v1018
        %v1090 = vunpack.c.l.b16 %v1019
        %v1091 = vunpack.c.l.b16 %v1020
        %v1092 = vunpack.c.l.b16 %v1021
        %v1093 = vunpack.c.l.b16 %v1022
        %v1094 = vunpack.c.l.b16 %v1023
        %v1095 = vunpack.c.l.b16 %v1024
        %v1096 = vunpack.c.l.b16 %v1025
        %v1097 = vunpack.c.l.b16 %v1026
        %v1098 = vunpack.c.l.b16 %v1027
        %v1099 = vunpack.c.l.b16 %v1028
        %v1100 = vunpack.c.l.b16 %v1029
        %v1101 = vunpack.c.l.b16 %v1030
        %v1102 = vunpack.c.l.b16 %v1031
        %v1103 = vunpack.c.l.b16 %v1032
        %v1104 = vunpack.c.l.b16 %v1033
        %v1105 = vunpack.c.l.b16 %v1034
        %v1106 = vunpack.c.l.b16 %v1035
        %v1107 = vunpack.c.l.b16 %v1036
        %v1108 = vunpack.c.l.b16 %v1037
        %v1109 = vunpack.c.l.b16 %v1038
        %v1110 = vunpack.c.l.b16 %v1039
        %v1111 = vunpack.c.l.b16 %v1040
        %v1112 = vunpack.c.l.b16 %v1041
        %v1113 = vunpack.c.l.b16 %v1042
        %v1114 = vunpack.c.l.b16 %v1043
        %v1115 = vunpack.c.l.b16 %v1044
        %v1116 = vunpack.c.l.b16 %v1045
        %v1117 = vunpack.c.l.b16 %v1046
        %v1118 = vunpack.c.l.b16 %v1047
        %v1119 = vpack.c.b16 %v1088, %v1087
        %v1120 = vpack.c.b16 %v1090, %v1089
        %v1121 = vpack.c.b16 %v1092, %v1091
        %v1122 = vpack.c.b16 %v1094, %v1093
        %v1123 = vpack.c.b16 %v1096, %v1095
        %v1124 = vpack.c.b16 %v1098, %v1097
        %v1125 = vpack.c.b16 %v1100, %v1099
        %v1126 = vpack.c.b16 %v1102, %v1101
        %v1127 = vpack.c.b16 %v1104, %v1103
        %v1128 = vpack.c.b16 %v1106, %v1105
        %v1129 = vpack.c.b16 %v1108, %v1107
        %v1130 = vpack.c.b16 %v1110, %v1109
        %v1131 = vpack.c.b16 %v1112, %v1111
        %v1132 = vpack.c.b16 %v1114, %v1113
        %v1133 = vpack.c.b16 %v1116, %v1115
        %v1134 = vpack.c.b16 %v1118, %v1117
        %1151 = vmatprep.subr.bf16.mxu0 0
        %1152 = vmatpush1.bf16.msra.mxu0 %v1119
        %1153 = vmatprep.subr.bf16.mxu0 0
        %1154 = vmatpush1.bf16.msra.mxu0 %v1120
        %1155 = vmatprep.subr.bf16.mxu0 0
        %1156 = vmatpush1.bf16.msra.mxu0 %v1121
        %1157 = vmatprep.subr.bf16.mxu0 0
        %1158 = vmatpush1.bf16.msra.mxu0 %v1122
        %1159 = vmatprep.subr.bf16.mxu0 0
        %1160 = vmatpush1.bf16.msra.mxu0 %v1123
        %1161 = vmatprep.subr.bf16.mxu0 0
        %1162 = vmatpush1.bf16.msra.mxu0 %v1124
        %1163 = vmatprep.subr.bf16.mxu0 0
        %1164 = vmatpush1.bf16.msra.mxu0 %v1125
        %1165 = vmatprep.subr.bf16.mxu0 0
        %1166 = vmatpush1.bf16.msra.mxu0 %v1126
        %1167 = vmatprep.subr.bf16.mxu0 0
        %1168 = vmatpush1.bf16.msra.mxu0 %v1127
        %1169 = vmatprep.subr.bf16.mxu0 0
        %1170 = vmatpush1.bf16.msra.mxu0 %v1128
        %1171 = vmatprep.subr.bf16.mxu0 0
        %1172 = vmatpush1.bf16.msra.mxu0 %v1129
        %1173 = vmatprep.subr.bf16.mxu0 0
        %1174 = vmatpush1.bf16.msra.mxu0 %v1130
        %1175 = vmatprep.subr.bf16.mxu0 0
        %1176 = vmatpush1.bf16.msra.mxu0 %v1131
        %1177 = vmatprep.subr.bf16.mxu0 0
        %1178 = vmatpush1.bf16.msra.mxu0 %v1132
        %1179 = vmatprep.subr.bf16.mxu0 0
        %1180 = vmatpush1.bf16.msra.mxu0 %v1133
        %1181 = vmatprep.subr.bf16.mxu0 0
        %1182 = vmatpush1.bf16.msra.mxu0 %v1134
        %1183 = vmatprep.mubr.bf16.mxu0 %v1013
        %1184 = vmatmul.mubr.bf16.gmra.mrb[0].mxu0 %v1012
        %v1185 = vpop.f32.mrb[0].mxu0
        %v1186 = vadd.f32 %v1053, %v1185
        %v1187 = vpop.f32.mrb[0].mxu0
        %v1188 = vpop.f32.mrb[0].mxu0
        %v1189 = vadd.f32 %v1053, %v1188
        %v1190 = vpop.f32.mrb[0].mxu0
        %1191 = vmatprep.mubr.bf16.mxu0 %v1015
        %1192 = vmatmul.mubr.bf16.gmra.mrb[0].mxu0 %v1014
        %v1193 = vpop.f32.mrb[0].mxu0
        %v1194 = vadd.f32 %v1053, %v1193
        %v1195 = vpop.f32.mrb[0].mxu0
        %v1196 = vpop.f32.mrb[0].mxu0
        %v1197 = vpop.f32.mrb[0].mxu0
        %1198 = vdwg.mxu0
        %1199 = vst [vmem:[%s386] sm:$0xff] %v1186
        %1200 = vst [vmem:[%s386 + $0x8] sm:$0xff] %v1189
        %1201 = vst [vmem:[%s386 + $0x10] sm:$0xff] %v1194
        %s1202 = sand.u32 %s232, 1
        %s1203 = scalar_lea.sflag [#allocation4], %s1202
        %s1204 = sand.u32 %s232, 1
        %s1205 = smul.addr %s1204, 24
        %s1206 = scalar_lea.vmem [#allocation8], %s1205
        // Predicated region
        $region69: #{tpu_custom_call.1} parent=55 // pred_check
          %p1207 = pneg %p242
        $region70: #{tpu_custom_call.1} parent=55 // pred_check_branch
          %1209 = sbr.rel (%p1207) target = $region72
        $region71: #{tpu_custom_call.1} parent=55 // pred_region
          %s1210 = smul.u32 3, %s25
          %s1212 = ssub.s32 384, 384
          %1213 = vsyncadd %s1203, %s1212
          %s1214 = smul.addr %s1210, 128
          %s1215 = scalar_lea.hbm %s9, %s1214
          %s1216 = sshll.u32 %s1206, 4
          %s1217 = int_to_ptr.vmem [resolvable:$true] %s1216
          %1222 = dma.vmem_to_hbm [thread:$0]  %s1217, 384, %s1215, %s1203, 128, 128, 8
        $region72: #{tpu_custom_call.1} parent=55 // pred_fallthru
          _
      $region56: #{tpu_custom_call.1} parent=5 // pred_fallthru
        _
      %p1223 = scmp.le.s32.totalorder 2, %s20
      // Predicated region
      $region73: #{tpu_custom_call.1} parent=5 // pred_check
        %p1224 = pneg %p1223
      $region74: #{tpu_custom_call.1} parent=5 // pred_check_branch
        %1226 = sbr.rel (%p1224) target = $region76
      $region75: #{tpu_custom_call.1} parent=5 // pred_region
        %s1227 = ssub.s32 %s20, 2
        // Predicated region
        $region77: #{tpu_custom_call.1} parent=75 // pred_check
          %p1228 = pneg %p248
        $region78: #{tpu_custom_call.1} parent=75 // pred_check_branch
          %1230 = sbr.rel (%p1228) target = $region80
        $region79: #{tpu_custom_call.1} parent=75 // pred_region
          %s1231 = sand.u32 %s233, 1
          %s1232 = scalar_lea.sflag [#allocation4], %s1231
          %s1233 = sand.u32 %s233, 1
          %s1234 = smul.addr %s1233, 24
          %s1235 = scalar_lea.vmem [#allocation8], %s1234
          %1236 = dma.done %s1232, 384
        $region80: #{tpu_custom_call.1} parent=75 // pred_fallthru
          _
      $region76: #{tpu_custom_call.1} parent=5 // pred_fallthru
        _
    $region6: #{tpu_custom_call.1} parent=1 // loop_footer
      %s24 = sadd.s32 1, %s20
    $region7: #{tpu_custom_call.1} parent=1 // loop_footer_branch
      %19 = sbr.rel target = $region3
    $region8: #{tpu_custom_call.1} parent=1 // loop_exit
      _
    %1237 = vsyncpa [#allocation3], 1
    %s1238 = scalar_lea.sflag [#allocation3], 1
    %1239 = vsyncpa %s1238, 1
    %1240 = vsyncpa [#allocation6], 1
    %1241 = vsyncpa [#allocation4], 1
    %s1242 = scalar_lea.sflag [#allocation4], 1
    %1243 = vsyncpa %s1242, 1

</llo_original>
